<compile_context>
chip_gen: v7x
topology: tpu7x:2x2x1
jax: 0.10.0
libtpu: 0.0.40
codegen_flags: <defaults>
</compile_context>

<pallas_src>
import functools
import math

import jax
import jax.numpy as jnp
from jax.experimental import pallas as pl
from jax.experimental.pallas import tpu as pltpu


# ----------------------------------------------------------------------------
# In-kernel building blocks (operate on VALUES already read from refs)
# ----------------------------------------------------------------------------

def _mha_block(xq, xkv, bias, wq, bq, wkv, bkv, wo, bo, *, heads, d_head):
    """Multi-head attention.

    xq : (B, Sq, D) f32          xkv : (B, Sk, D) f32
    bias : (Sq, Sk) f32 additive mask bias ((mask - 1) * 1e9)
    wq : (D, D) bf16 (1/sqrt(dk) folded)   bq : (1, D) f32 (scaled)
    wkv: (D, 2D) bf16                      bkv: (1, 2D) f32
    wo : (D, D) bf16                       bo : (1, D) f32
    returns out (B, Sq, D) f32, attn (B, H, Sq, Sk) f32
    """
    B, Sq, D = xq.shape
    Sk = xkv.shape[1]
    bf16 = jnp.bfloat16

    # Lane-dense fused projections on the MXU (f32 accumulation); no head/batch
    # broadcasting of operands, one matmul for Q and one for K|V.
    xq2 = xq.reshape(B * Sq, D).astype(bf16)
    q2 = jnp.dot(xq2, wq, preferred_element_type=jnp.float32) + bq          # (B*Sq, D)
    xkv2 = xkv.reshape(B * Sk, D).astype(bf16)
    kv2 = jnp.dot(xkv2, wkv, preferred_element_type=jnp.float32) + bkv      # (B*Sk, 2D)

    # Single bf16 cast of each MXU operand.
    q3 = q2.reshape(B, Sq, D).astype(bf16)
    k3 = kv2[:, :D].reshape(B, Sk, D).astype(bf16)
    v3 = kv2[:, D:].reshape(B, Sk, D).astype(bf16)

    bias_b = jnp.broadcast_to(bias[None], (B, Sq, Sk))   # hoisted out of the head loop

    attn_heads = []
    ctx_heads = []
    for h in range(heads):                 # static head loop; lane slices only
        lo = h * d_head
        qh = q3[:, :, lo:lo + d_head]
        kh = k3[:, :, lo:lo + d_head]
        vh = v3[:, :, lo:lo + d_head]
        s = jnp.einsum("bqd,bkd->bqk", qh, kh,
                       preferred_element_type=jnp.float32) + bias_b         # (B,Sq,Sk)
        m = jnp.max(s, axis=-1, keepdims=True)
        e = jnp.exp(s - m)                                                   # f32 softmax
        a = e * pl.reciprocal(jnp.sum(e, axis=-1, keepdims=True), approx=True)
        attn_heads.append(a)
        ctx_heads.append(jnp.einsum("bqk,bkd->bqd", a.astype(bf16), vh,
                                    preferred_element_type=jnp.float32))     # (B,Sq,dk)

    attn = jnp.stack(attn_heads, axis=1)                   # (B, H, Sq, Sk)

    # Output projection: accumulate per-head (dk, D) contributions of the original Wo
    # (sublane-aligned row slices) into one f32 slab; no broadcasts, no partials buffer.
    out2 = jnp.zeros((B * Sq, D), jnp.float32)
    for h in range(heads):
        lo = h * d_head
        out2 = out2 + jnp.dot(ctx_heads[h].reshape(B * Sq, d_head).astype(bf16),
                              wo[lo:lo + d_head, :],
                              preferred_element_type=jnp.float32)
    out2 = out2 + bo
    return out2.reshape(B, Sq, D), attn


def _add_layernorm(x, r, gamma, beta, eps=1e-5):
    """LayerNorm(x + r) over the last dim, f32 math (matches nn.LayerNorm)."""
    y = x + r
    mu = jnp.mean(y, axis=-1, keepdims=True)
    var = jnp.mean(jnp.square(y - mu), axis=-1, keepdims=True)
    yn = (y - mu) * jax.lax.rsqrt(var + eps)
    return yn * gamma[None, :, :] + beta[None, :, :]


def _ffn(x2, w1, b1, w2, b2):
    """relu(x @ W1 + b1) @ W2 + b2 on a 2-D (B*S, D) slab; bf16 MXU, f32 accumulate."""
    h = jnp.dot(x2.astype(jnp.bfloat16), w1, preferred_element_type=jnp.float32) + b1
    h = jnp.maximum(h, 0.0)
    return jnp.dot(h.astype(jnp.bfloat16), w2, preferred_element_type=jnp.float32) + b2


# ----------------------------------------------------------------------------
# Fused stack kernels (grid = (B, num_layers); batch "parallel", layers "arbitrary")
# ----------------------------------------------------------------------------

def encoder_stack_kernel(x_ref, bias_ref,
                         wq_ref, bq_ref, wkv_ref, bkv_ref, wo_ref, bo_ref,
                         g1_ref, b1_ref, w1_ref, fb1_ref, w2_ref, fb2_ref,
                         g2_ref, b2_ref,
                         out_ref, attn_ref, *, heads, d_head):
    layer = pl.program_id(1)

    @pl.when(layer == 0)
    def _():
        out_ref[...] = x_ref[...]          # seed the VMEM-resident carry

    x = out_ref[...]                       # (1, S, D) f32 (one batch element per block)
    B, S, D = x.shape

    attn_out, attn = _mha_block(
        x, x, bias_ref[...],
        wq_ref[0], bq_ref[0], wkv_ref[0], bkv_ref[0], wo_ref[0], bo_ref[0],
        heads=heads, d_head=d_head)
    attn_ref[0] = attn                     # one store per layer

    x = _add_layernorm(x, attn_out, g1_ref[0], b1_ref[0])
    ff = _ffn(x.reshape(B * S, D), w1_ref[0], fb1_ref[0],
              w2_ref[0], fb2_ref[0]).reshape(B, S, D)
    x = _add_layernorm(x, ff, g2_ref[0], b2_ref[0])

    out_ref[...] = x                       # carry; flushed to HBM after the last layer


def decoder_stack_kernel(x_ref, enc_ref, tgt_bias_ref, cross_bias_ref,
                         sa_wq_ref, sa_bq_ref, sa_wkv_ref, sa_bkv_ref,
                         sa_wo_ref, sa_bo_ref, g1_ref, b1_ref,
                         ca_wq_ref, ca_bq_ref, ca_wkv_ref, ca_bkv_ref,
                         ca_wo_ref, ca_bo_ref, g2_ref, b2_ref,
                         w1_ref, fb1_ref, w2_ref, fb2_ref, g3_ref, b3_ref,
                         fcw_ref, fcb_ref,
                         logits_ref, self_attn_ref, cross_attn_ref,
                         x_scr, *, heads, d_head):
    layer = pl.program_id(1)

    @pl.when(layer == 0)
    def _():
        x_scr[...] = x_ref[...]            # VMEM scratch carry for the decoder state

    x = x_scr[...]                         # (1, St, D) f32
    B, St, D = x.shape
    enc = enc_ref[...]                     # (1, Ss, D) f32

    a1_out, a1 = _mha_block(
        x, x, tgt_bias_ref[...],
        sa_wq_ref[0], sa_bq_ref[0], sa_wkv_ref[0], sa_bkv_ref[0],
        sa_wo_ref[0], sa_bo_ref[0], heads=heads, d_head=d_head)
    self_attn_ref[0] = a1
    x = _add_layernorm(x, a1_out, g1_ref[0], b1_ref[0])

    a2_out, a2 = _mha_block(
        x, enc, cross_bias_ref[...],
        ca_wq_ref[0], ca_bq_ref[0], ca_wkv_ref[0], ca_bkv_ref[0],
        ca_wo_ref[0], ca_bo_ref[0], heads=heads, d_head=d_head)
    cross_attn_ref[0] = a2
    x = _add_layernorm(x, a2_out, g2_ref[0], b2_ref[0])

    ff = _ffn(x.reshape(B * St, D), w1_ref[0], fb1_ref[0],
              w2_ref[0], fb2_ref[0]).reshape(B, St, D)
    x = _add_layernorm(x, ff, g3_ref[0], b3_ref[0])

    x_scr[...] = x

    @pl.when(layer == pl.num_programs(1) - 1)
    def _():
        # Fused final vocab projection; output lane-padded to 128 (lane-dense stores).
        Vp = fcw_ref.shape[1]
        flat = x.reshape(B * St, D).astype(jnp.bfloat16)
        logits = jnp.dot(flat, fcw_ref[...],
                         preferred_element_type=jnp.float32) + fcb_ref[...]
        logits_ref[...] = logits.reshape(B, St, Vp)


# ----------------------------------------------------------------------------
# BlockSpec helpers + pallas_call wrappers
# ----------------------------------------------------------------------------

def _const_spec(shape):
    nd = len(shape)
    return pl.BlockSpec(tuple(shape), lambda b, l: (0,) * nd)


def _batch_spec(shape):
    nd = len(shape)
    return pl.BlockSpec((1,) + tuple(shape[1:]), lambda b, l: (b,) + (0,) * (nd - 1))


def _layer_spec(shape):
    nd = len(shape)
    return pl.BlockSpec((1,) + tuple(shape[1:]), lambda b, l: (l,) + (0,) * (nd - 1))


def _layer_batch_spec(shape):
    nd = len(shape)
    return pl.BlockSpec((1, 1) + tuple(shape[2:]),
                        lambda b, l: (l, b) + (0,) * (nd - 2))


_COMPILER_PARAMS = dict(vmem_limit_bytes=32 * 1024 * 1024)


def encoder_stack_forward(x, bias, ep, *, num_heads):
    B, S, D = x.shape
    L = ep["wq"].shape[0]
    H = num_heads
    dk = D // H

    in_arrays = [x, bias,
                 ep["wq"], ep["bq"], ep["wkv"], ep["bkv"], ep["wo"], ep["bo"],
                 ep["g1"], ep["b1"], ep["w1"], ep["fb1"], ep["w2"], ep["fb2"],
                 ep["g2"], ep["b2"]]
    in_specs = ([_batch_spec(x.shape), _const_spec(bias.shape)]
                + [_layer_spec(a.shape) for a in in_arrays[2:]])

    out_shape = (jax.ShapeDtypeStruct((B, S, D), jnp.float32),
                 jax.ShapeDtypeStruct((L, B, H, S, S), jnp.float32))
    out_specs = (_batch_spec((B, S, D)), _layer_batch_spec((L, B, H, S, S)))

    kern = functools.partial(encoder_stack_kernel, heads=H, d_head=dk)
    enc_out, attn = pl.pallas_call(
        kern,
        out_shape=out_shape,
        grid=(B, L),
        in_specs=in_specs,
        out_specs=out_specs,
        compiler_params=pltpu.CompilerParams(
            dimension_semantics=("parallel", "arbitrary"), **_COMPILER_PARAMS),
    )(*in_arrays)
    return enc_out, attn


def decoder_stack_forward(x, enc_out, tgt_bias, cross_bias, dp, fc_w, fc_b, *, num_heads):
    B, St, D = x.shape
    Ss = enc_out.shape[1]
    L = dp["sa_wq"].shape[0]
    H = num_heads
    dk = D // H
    Vp = fc_w.shape[1]

    in_arrays = [x, enc_out, tgt_bias, cross_bias,
                 dp["sa_wq"], dp["sa_bq"], dp["sa_wkv"], dp["sa_bkv"],
                 dp["sa_wo"], dp["sa_bo"], dp["g1"], dp["b1"],
                 dp["ca_wq"], dp["ca_bq"], dp["ca_wkv"], dp["ca_bkv"],
                 dp["ca_wo"], dp["ca_bo"], dp["g2"], dp["b2"],
                 dp["w1"], dp["fb1"], dp["w2"], dp["fb2"], dp["g3"], dp["b3"],
                 fc_w, fc_b]
    in_specs = ([_batch_spec(x.shape), _batch_spec(enc_out.shape),
                 _const_spec(tgt_bias.shape), _const_spec(cross_bias.shape)]
                + [_layer_spec(a.shape) for a in in_arrays[4:26]]
                + [_const_spec(fc_w.shape), _const_spec(fc_b.shape)])

    out_shape = (jax.ShapeDtypeStruct((B, St, Vp), jnp.float32),
                 jax.ShapeDtypeStruct((L, B, H, St, St), jnp.float32),
                 jax.ShapeDtypeStruct((L, B, H, St, Ss), jnp.float32))
    out_specs = (_batch_spec((B, St, Vp)),
                 _layer_batch_spec((L, B, H, St, St)),
                 _layer_batch_spec((L, B, H, St, Ss)))

    kern = functools.partial(decoder_stack_kernel, heads=H, d_head=dk)
    logits_p, sa, ca = pl.pallas_call(
        kern,
        out_shape=out_shape,
        grid=(B, L),
        in_specs=in_specs,
        out_specs=out_specs,
        scratch_shapes=[pltpu.VMEM((1, St, D), jnp.float32)],
        compiler_params=pltpu.CompilerParams(
            dimension_semantics=("parallel", "arbitrary"), **_COMPILER_PARAMS),
    )(*in_arrays)
    return logits_p, sa, ca


# ----------------------------------------------------------------------------
# Parameter init (mirrors the PyTorch module) + host-side packing for the kernels
# ----------------------------------------------------------------------------

def init_linear(key, d_in, d_out):
    kw, kb = jax.random.split(key)
    bound = 1.0 / math.sqrt(d_in)
    w = jax.random.uniform(kw, (d_in, d_out), jnp.float32, -bound, bound)
    b = jax.random.uniform(kb, (1, d_out), jnp.float32, -bound, bound)
    return w, b


def init_mha_raw(key, d_model):
    ks = jax.random.split(key, 4)
    p = {}
    for name, k in zip(("q", "k", "v", "o"), ks):
        w, b = init_linear(k, d_model, d_model)
        p["w" + name], p["b" + name] = w, b
    return p


def pack_mha(raw, d_model, num_heads, prefix=""):
    """Host-side layout prep: fused K|V slab, 1/sqrt(dk) folded into Wq/bq, bf16 MXU weights."""
    dk = d_model // num_heads
    scale = 1.0 / math.sqrt(dk)
    return {
        prefix + "wq": (raw["wq"] * scale).astype(jnp.bfloat16),                 # (D, D)
        prefix + "bq": raw["bq"] * scale,                                        # (1, D)
        prefix + "wkv": jnp.concatenate([raw["wk"], raw["wv"]],
                                        axis=1).astype(jnp.bfloat16),            # (D, 2D)
        prefix + "bkv": jnp.concatenate([raw["bk"], raw["bv"]], axis=1),         # (1, 2D)
        prefix + "wo": raw["wo"].astype(jnp.bfloat16),                           # (D, D)
        prefix + "bo": raw["bo"],                                                # (1, D)
    }


def init_encoder_layer(key, d_model, num_heads, d_ff):
    k1, k2, k3 = jax.random.split(key, 3)
    p = pack_mha(init_mha_raw(k1, d_model), d_model, num_heads)
    w1, fb1 = init_linear(k2, d_model, d_ff)
    w2, fb2 = init_linear(k3, d_ff, d_model)
    p.update({
        "g1": jnp.ones((1, d_model), jnp.float32), "b1": jnp.zeros((1, d_model), jnp.float32),
        "w1": w1.astype(jnp.bfloat16), "fb1": fb1,
        "w2": w2.astype(jnp.bfloat16), "fb2": fb2,
        "g2": jnp.ones((1, d_model), jnp.float32), "b2": jnp.zeros((1, d_model), jnp.float32),
    })
    return p


def init_decoder_layer(key, d_model, num_heads, d_ff):
    k1, k2, k3, k4 = jax.random.split(key, 4)
    p = {}
    p.update(pack_mha(init_mha_raw(k1, d_model), d_model, num_heads, prefix="sa_"))
    p.update(pack_mha(init_mha_raw(k2, d_model), d_model, num_heads, prefix="ca_"))
    w1, fb1 = init_linear(k3, d_model, d_ff)
    w2, fb2 = init_linear(k4, d_ff, d_model)
    p.update({
        "g1": jnp.ones((1, d_model), jnp.float32), "b1": jnp.zeros((1, d_model), jnp.float32),
        "g2": jnp.ones((1, d_model), jnp.float32), "b2": jnp.zeros((1, d_model), jnp.float32),
        "g3": jnp.ones((1, d_model), jnp.float32), "b3": jnp.zeros((1, d_model), jnp.float32),
        "w1": w1.astype(jnp.bfloat16), "fb1": fb1,
        "w2": w2.astype(jnp.bfloat16), "fb2": fb2,
    })
    return p


def stack_layers(layers):
    return jax.tree_util.tree_map(lambda *xs: jnp.stack(xs, axis=0), *layers)


def make_positional_encoding(d_model, max_len):
    position = jnp.arange(max_len, dtype=jnp.float32)[:, None]
    div_term = jnp.exp(jnp.arange(0, d_model, 2, dtype=jnp.float32)
                       * (-math.log(10000.0) / d_model))
    pe = jnp.zeros((max_len, d_model), jnp.float32)
    pe = pe.at[:, 0::2].set(jnp.sin(position * div_term))
    pe = pe.at[:, 1::2].set(jnp.cos(position * div_term))
    return pe


def init_transformer(key, src_vocab, tgt_vocab, d_model, num_heads, num_layers,
                     d_ff, max_len):
    keys = jax.random.split(key, 3 + 2 * num_layers)
    enc_layers = [init_encoder_layer(keys[2 + i], d_model, num_heads, d_ff)
                  for i in range(num_layers)]
    dec_layers = [init_decoder_layer(keys[2 + num_layers + i], d_model, num_heads, d_ff)
                  for i in range(num_layers)]
    fc_w, fc_b = init_linear(keys[2 + 2 * num_layers], d_model, tgt_vocab)

    # Pad the vocab projection to 128 lanes (lane-dense stores); slice back outside.
    v_pad = ((tgt_vocab + 127) // 128) * 128
    fc_w_p = jnp.zeros((d_model, v_pad), jnp.float32).at[:, :tgt_vocab].set(fc_w)
    fc_b_p = jnp.zeros((1, v_pad), jnp.float32).at[:, :tgt_vocab].set(fc_b)

    return {
        "enc_emb": jax.random.normal(keys[0], (src_vocab, d_model), jnp.float32),
        "dec_emb": jax.random.normal(keys[1], (tgt_vocab, d_model), jnp.float32),
        "pe": make_positional_encoding(d_model, max_len),
        "enc": stack_layers(enc_layers),
        "dec": stack_layers(dec_layers),
        "fc_w": fc_w_p.astype(jnp.bfloat16),
        "fc_b": fc_b_p,
        "num_heads": num_heads,
        "tgt_vocab": tgt_vocab,
    }


# ----------------------------------------------------------------------------
# Forward pass (embedding/PE glue in JAX, everything else in two fused kernels)
# ----------------------------------------------------------------------------

def transformer_forward(params, src, tgt, src_mask=None, tgt_mask=None):
    """Mirrors Transformer.forward (dropout = identity, no plotting)."""
    H = params["num_heads"]
    B, Ss = src.shape
    St = tgt.shape[1]

    def to_bias(mask, shape):
        if mask is None:
            return jnp.zeros(shape, jnp.float32)
        m = jnp.broadcast_to(jnp.asarray(mask, jnp.float32), shape)
        return (m - 1.0) * jnp.float32(1e9)

    enc_bias = to_bias(src_mask, (Ss, Ss))
    tgt_bias = to_bias(tgt_mask, (St, St))

    # Decoder cross-attention respects src_mask (matches mha2(x, enc, enc, src_mask)).
    if src_mask is None:
        cross_bias = jnp.zeros((St, Ss), jnp.float32)
    else:
        sm = jnp.asarray(src_mask, jnp.float32).reshape(-1, Ss)
        if sm.shape[0] in (1, St):
            cm = jnp.broadcast_to(sm, (St, Ss))
        else:
            # (Ss, Ss) self-attn-style mask with St != Ss: use its key-padding pattern
            # (last row) for every decoder query row.
            cm = jnp.broadcast_to(sm[-1:], (St, Ss))
        cross_bias = (cm - 1.0) * jnp.float32(1e9)

    # Embedding lookup + positional encoding (glue, plain JAX gather/add).
    src_emb = jnp.take(params["enc_emb"], src, axis=0) + params["pe"][None, :Ss, :]
    tgt_emb = jnp.take(params["dec_emb"], tgt, axis=0) + params["pe"][None, :St, :]

    enc_out, enc_attn = encoder_stack_forward(src_emb, enc_bias, params["enc"],
                                              num_heads=H)
    logits_p, dec_sa, dec_ca = decoder_stack_forward(
        tgt_emb, enc_out, tgt_bias, cross_bias,
        params["dec"], params["fc_w"], params["fc_b"], num_heads=H)

    logits = logits_p[:, :, :params["tgt_vocab"]]
    L = enc_attn.shape[0]
    enc_attns = [enc_attn[l] for l in range(L)]
    dec_self_attns = [dec_sa[l] for l in range(L)]
    dec_enc_attns = [dec_ca[l] for l in range(L)]
    # TODO(synk): visualize_attention (matplotlib heatmap plotting) has no kernel equivalent.
    return logits, enc_attns, dec_self_attns, dec_enc_attns


# ----------------------------------------------------------------------------
# Main
# ----------------------------------------------------------------------------

if __name__ == "__main__":
    B, S = 2, 8
    D_MODEL, NUM_HEADS, NUM_LAYERS, D_FF = 64, 4, 2, 256
    SRC_VOCAB = TGT_VOCAB = 32
    MAX_LEN = 100

    key = jax.random.PRNGKey(0)
    kp, ks, kt = jax.random.split(key, 3)

    params = init_transformer(kp, SRC_VOCAB, TGT_VOCAB, D_MODEL, NUM_HEADS,
                              NUM_LAYERS, D_FF, MAX_LEN)

    src = jax.random.randint(ks, (B, S), 0, SRC_VOCAB, dtype=jnp.int32)
    tgt = jax.random.randint(kt, (B, S), 0, TGT_VOCAB, dtype=jnp.int32)

    # causal mask for decoder self-attention, full-ones mask for encoder self-attention
    tgt_mask = jnp.tril(jnp.ones((S, S), jnp.float32))
    src_mask = jnp.ones((S, S), jnp.float32)

    logits, enc_attns, dec_self_attns, dec_enc_attns = transformer_forward(
        params, src, tgt, src_mask=src_mask, tgt_mask=tgt_mask)

    jax.block_until_ready(logits)
    for a in enc_attns + dec_self_attns + dec_enc_attns:
        jax.block_until_ready(a)

    assert logits.shape == (B, S, TGT_VOCAB)
    assert len(enc_attns) == NUM_LAYERS
    assert enc_attns[0].shape == (B, NUM_HEADS, S, S)
    assert dec_self_attns[0].shape == (B, NUM_HEADS, S, S)
    assert dec_enc_attns[0].shape == (B, NUM_HEADS, S, S)
    assert bool(jnp.all(jnp.isfinite(logits)))

    print("KERNEL_OK")
</pallas_src>

<mosaic_0001>
module attributes {stable_mosaic.version = 11 : i64} {
  func.func @encoder_stack_kernel(%arg0: i32, %arg1: i32, %arg2: memref<1x8x64xf32, #tpu.memory_space<vmem>>, %arg3: memref<8x8xf32, #tpu.memory_space<vmem>>, %arg4: memref<1x64x64xbf16, #tpu.memory_space<vmem>>, %arg5: memref<1x1x64xf32, #tpu.memory_space<vmem>>, %arg6: memref<1x64x128xbf16, #tpu.memory_space<vmem>>, %arg7: memref<1x1x128xf32, #tpu.memory_space<vmem>>, %arg8: memref<1x64x64xbf16, #tpu.memory_space<vmem>>, %arg9: memref<1x1x64xf32, #tpu.memory_space<vmem>>, %arg10: memref<1x1x64xf32, #tpu.memory_space<vmem>>, %arg11: memref<1x1x64xf32, #tpu.memory_space<vmem>>, %arg12: memref<1x64x256xbf16, #tpu.memory_space<vmem>>, %arg13: memref<1x1x256xf32, #tpu.memory_space<vmem>>, %arg14: memref<1x256x64xbf16, #tpu.memory_space<vmem>>, %arg15: memref<1x1x64xf32, #tpu.memory_space<vmem>>, %arg16: memref<1x1x64xf32, #tpu.memory_space<vmem>>, %arg17: memref<1x1x64xf32, #tpu.memory_space<vmem>>, %arg18: memref<1x8x64xf32, #tpu.memory_space<vmem>>, %arg19: memref<1x1x4x8x8xf32, #tpu.memory_space<vmem>>) attributes {dimension_semantics = [#tpu.dimension_semantics<parallel>, #tpu.dimension_semantics<arbitrary>], iteration_bounds = array<i64: 2, 2>, scalar_prefetch = 0 : i64, scratch_operands = 0 : i64, tpu.core_type = #tpu.core_type<tc>, window_params = [{transform_indices = @transform_0, window_bounds = array<i64: 1, 8, 64>}, {pipeline_mode = #tpu.pipeline_mode<synchronous>, transform_indices = @transform_1, window_bounds = array<i64: 8, 8>}, {transform_indices = @transform_2, window_bounds = array<i64: 1, 64, 64>}, {transform_indices = @transform_3, window_bounds = array<i64: 1, 1, 64>}, {transform_indices = @transform_4, window_bounds = array<i64: 1, 64, 128>}, {transform_indices = @transform_5, window_bounds = array<i64: 1, 1, 128>}, {transform_indices = @transform_6, window_bounds = array<i64: 1, 64, 64>}, {transform_indices = @transform_7, window_bounds = array<i64: 1, 1, 64>}, {transform_indices = @transform_8, window_bounds = array<i64: 1, 1, 64>}, {transform_indices = @transform_9, window_bounds = array<i64: 1, 1, 64>}, {transform_indices = @transform_10, window_bounds = array<i64: 1, 64, 256>}, {transform_indices = @transform_11, window_bounds = array<i64: 1, 1, 256>}, {transform_indices = @transform_12, window_bounds = array<i64: 1, 256, 64>}, {transform_indices = @transform_13, window_bounds = array<i64: 1, 1, 64>}, {transform_indices = @transform_14, window_bounds = array<i64: 1, 1, 64>}, {transform_indices = @transform_15, window_bounds = array<i64: 1, 1, 64>}, {transform_indices = @transform_16, window_bounds = array<i64: 1, 8, 64>}, {transform_indices = @transform_17, window_bounds = array<i64: 1, 1, 4, 8, 8>}]} {
    %c0_i32 = arith.constant 0 : i32
    %0 = arith.cmpi eq, %arg1, %c0_i32 : i32
    %1 = arith.extui %0 : i1 to i32
    %c0_i32_0 = arith.constant 0 : i32
    %2 = arith.cmpi ne, %1, %c0_i32_0 : i32
    scf.if %2 {
      %c0_90 = arith.constant 0 : index
      %c0_91 = arith.constant 0 : index
      %c0_92 = arith.constant 0 : index
      %215 = vector.load %arg2[%c0_90, %c0_91, %c0_92] : memref<1x8x64xf32, #tpu.memory_space<vmem>>, vector<1x8x64xf32>
      %c0_93 = arith.constant 0 : index
      %c0_94 = arith.constant 0 : index
      %c0_95 = arith.constant 0 : index
      %216 = vector.load %arg18[%c0_93, %c0_94, %c0_95] : memref<1x8x64xf32, #tpu.memory_space<vmem>>, vector<1x8x64xf32>
      tpu.vector_store %arg18[%c0_93, %c0_94, %c0_95], %215 {strides = array<i32>} : memref<1x8x64xf32, #tpu.memory_space<vmem>>, vector<1x8x64xf32>,
    } else {
    }
    %c0 = arith.constant 0 : index
    %c0_1 = arith.constant 0 : index
    %c0_2 = arith.constant 0 : index
    %3 = vector.load %arg18[%c0, %c0_1, %c0_2] : memref<1x8x64xf32, #tpu.memory_space<vmem>>, vector<1x8x64xf32>
    %c0_3 = arith.constant 0 : index
    %c0_4 = arith.constant 0 : index
    %4 = vector.load %arg3[%c0_3, %c0_4] : memref<8x8xf32, #tpu.memory_space<vmem>>, vector<8x8xf32>
    %c0_5 = arith.constant 0 : index
    %c0_6 = arith.constant 0 : index
    %c0_7 = arith.constant 0 : index
    %5 = vector.load %arg4[%c0_5, %c0_6, %c0_7] : memref<1x64x64xbf16, #tpu.memory_space<vmem>>, vector<1x64x64xbf16>
    %6 = vector.shape_cast %5 : vector<1x64x64xbf16> to vector<64x64xbf16>
    %c0_8 = arith.constant 0 : index
    %c0_9 = arith.constant 0 : index
    %c0_10 = arith.constant 0 : index
    %7 = vector.load %arg5[%c0_8, %c0_9, %c0_10] : memref<1x1x64xf32, #tpu.memory_space<vmem>>, vector<1x1x64xf32>
    %8 = vector.shape_cast %7 : vector<1x1x64xf32> to vector<1x64xf32>
    %c0_11 = arith.constant 0 : index
    %c0_12 = arith.constant 0 : index
    %c0_13 = arith.constant 0 : index
    %9 = vector.load %arg6[%c0_11, %c0_12, %c0_13] : memref<1x64x128xbf16, #tpu.memory_space<vmem>>, vector<1x64x128xbf16>
    %10 = vector.shape_cast %9 : vector<1x64x128xbf16> to vector<64x128xbf16>
    %c0_14 = arith.constant 0 : index
    %c0_15 = arith.constant 0 : index
    %c0_16 = arith.constant 0 : index
    %11 = vector.load %arg7[%c0_14, %c0_15, %c0_16] : memref<1x1x128xf32, #tpu.memory_space<vmem>>, vector<1x1x128xf32>
    %12 = vector.shape_cast %11 : vector<1x1x128xf32> to vector<1x128xf32>
    %c0_17 = arith.constant 0 : index
    %c0_18 = arith.constant 0 : index
    %c0_19 = arith.constant 0 : index
    %13 = vector.load %arg8[%c0_17, %c0_18, %c0_19] : memref<1x64x64xbf16, #tpu.memory_space<vmem>>, vector<1x64x64xbf16>
    %14 = vector.shape_cast %13 : vector<1x64x64xbf16> to vector<64x64xbf16>
    %c0_20 = arith.constant 0 : index
    %c0_21 = arith.constant 0 : index
    %c0_22 = arith.constant 0 : index
    %15 = vector.load %arg9[%c0_20, %c0_21, %c0_22] : memref<1x1x64xf32, #tpu.memory_space<vmem>>, vector<1x1x64xf32>
    %16 = vector.shape_cast %15 : vector<1x1x64xf32> to vector<1x64xf32>
    %17 = vector.shape_cast %3 : vector<1x8x64xf32> to vector<8x64xf32>
    %18 = arith.truncf %17 : vector<8x64xf32> to vector<8x64xbf16>
    %cst = arith.constant dense<0.000000e+00> : vector<8x64xf32>
    %19 = tpu.matmul %18, %6, %cst {dimension_numbers = #tpu.dot_dimension_numbers<[1], [0], [0], [1], [0, 0, 1, 1], [], []>} : vector<8x64xbf16>, vector<64x64xbf16>, vector<8x64xf32> -> vector<8x64xf32>
    %20 = vector.broadcast %8 : vector<1x64xf32> to vector<8x64xf32>
    %21 = arith.addf %19, %20 : vector<8x64xf32>
    %22 = vector.shape_cast %3 : vector<1x8x64xf32> to vector<8x64xf32>
    %23 = arith.truncf %22 : vector<8x64xf32> to vector<8x64xbf16>
    %cst_23 = arith.constant dense<0.000000e+00> : vector<8x128xf32>
    %24 = tpu.matmul %23, %10, %cst_23 {dimension_numbers = #tpu.dot_dimension_numbers<[1], [0], [0], [1], [0, 0, 1, 1], [], []>} : vector<8x64xbf16>, vector<64x128xbf16>, vector<8x128xf32> -> vector<8x128xf32>
    %25 = vector.broadcast %12 : vector<1x128xf32> to vector<8x128xf32>
    %26 = arith.addf %24, %25 : vector<8x128xf32>
    %27 = vector.shape_cast %21 : vector<8x64xf32> to vector<1x8x64xf32>
    %28 = arith.truncf %27 : vector<1x8x64xf32> to vector<1x8x64xbf16>
    %29 = vector.extract_strided_slice %26 {offsets = [0, 0], sizes = [8, 64], strides = [1, 1]} : vector<8x128xf32> to vector<8x64xf32>
    %30 = vector.shape_cast %29 : vector<8x64xf32> to vector<1x8x64xf32>
    %31 = arith.truncf %30 : vector<1x8x64xf32> to vector<1x8x64xbf16>
    %32 = vector.extract_strided_slice %26 {offsets = [0, 64], sizes = [8, 64], strides = [1, 1]} : vector<8x128xf32> to vector<8x64xf32>
    %33 = vector.shape_cast %32 : vector<8x64xf32> to vector<1x8x64xf32>
    %34 = arith.truncf %33 : vector<1x8x64xf32> to vector<1x8x64xbf16>
    %35 = vector.shape_cast %4 : vector<8x8xf32> to vector<1x8x8xf32>
    %36 = vector.extract_strided_slice %28 {offsets = [0, 0, 0], sizes = [1, 8, 16], strides = [1, 1, 1]} : vector<1x8x64xbf16> to vector<1x8x16xbf16>
    %37 = vector.extract_strided_slice %31 {offsets = [0, 0, 0], sizes = [1, 8, 16], strides = [1, 1, 1]} : vector<1x8x64xbf16> to vector<1x8x16xbf16>
    %38 = vector.extract_strided_slice %34 {offsets = [0, 0, 0], sizes = [1, 8, 16], strides = [1, 1, 1]} : vector<1x8x64xbf16> to vector<1x8x16xbf16>
    "tpu.trace_start"() <{level = 10 : i32, message = "bqd,bkd->bqk"}> : () -> ()
    %cst_24 = arith.constant dense<0.000000e+00> : vector<1x8x8xf32>
    %39 = tpu.matmul %36, %37, %cst_24 {dimension_numbers = #tpu.dot_dimension_numbers<[2], [2], [1], [1], [0, 0, 0, 1, 1, 1], [0], [0]>} : vector<1x8x16xbf16>, vector<1x8x16xbf16>, vector<1x8x8xf32> -> vector<1x8x8xf32>
    "tpu.trace_stop"() : () -> ()
    %40 = arith.addf %39, %35 : vector<1x8x8xf32>
    %cst_25 = arith.constant dense<0xFF800000> : vector<1x8xf32>
    %41 = vector.multi_reduction <maximumf>, %40, %cst_25 [2] : vector<1x8x8xf32> to vector<1x8xf32>
    %42 = vector.shape_cast %41 : vector<1x8xf32> to vector<1x8x1xf32>
    %43 = vector.broadcast %42 : vector<1x8x1xf32> to vector<1x8x8xf32>
    %44 = arith.subf %40, %43 : vector<1x8x8xf32>
    %45 = math.exp %44 : vector<1x8x8xf32>
    %cst_26 = arith.constant dense<0.000000e+00> : vector<1x8xf32>
    %46 = vector.multi_reduction <add>, %45, %cst_26 [2] : vector<1x8x8xf32> to vector<1x8xf32>
    %47 = vector.shape_cast %46 : vector<1x8xf32> to vector<1x8x1xf32>
    %48 = tpu.reciprocal %47 {approx = true} : vector<1x8x1xf32> -> vector<1x8x1xf32>
    %49 = vector.broadcast %48 : vector<1x8x1xf32> to vector<1x8x8xf32>
    %50 = arith.mulf %45, %49 : vector<1x8x8xf32>
    %51 = arith.truncf %50 : vector<1x8x8xf32> to vector<1x8x8xbf16>
    "tpu.trace_start"() <{level = 10 : i32, message = "bqk,bkd->bqd"}> : () -> ()
    %cst_27 = arith.constant dense<0.000000e+00> : vector<1x8x16xf32>
    %52 = tpu.matmul %51, %38, %cst_27 {dimension_numbers = #tpu.dot_dimension_numbers<[2], [1], [1], [2], [0, 0, 0, 1, 1, 2], [0], [0]>} : vector<1x8x8xbf16>, vector<1x8x16xbf16>, vector<1x8x16xf32> -> vector<1x8x16xf32>
    "tpu.trace_stop"() : () -> ()
    %53 = vector.extract_strided_slice %28 {offsets = [0, 0, 16], sizes = [1, 8, 16], strides = [1, 1, 1]} : vector<1x8x64xbf16> to vector<1x8x16xbf16>
    %54 = vector.extract_strided_slice %31 {offsets = [0, 0, 16], sizes = [1, 8, 16], strides = [1, 1, 1]} : vector<1x8x64xbf16> to vector<1x8x16xbf16>
    %55 = vector.extract_strided_slice %34 {offsets = [0, 0, 16], sizes = [1, 8, 16], strides = [1, 1, 1]} : vector<1x8x64xbf16> to vector<1x8x16xbf16>
    "tpu.trace_start"() <{level = 10 : i32, message = "bqd,bkd->bqk"}> : () -> ()
    %cst_28 = arith.constant dense<0.000000e+00> : vector<1x8x8xf32>
    %56 = tpu.matmul %53, %54, %cst_28 {dimension_numbers = #tpu.dot_dimension_numbers<[2], [2], [1], [1], [0, 0, 0, 1, 1, 1], [0], [0]>} : vector<1x8x16xbf16>, vector<1x8x16xbf16>, vector<1x8x8xf32> -> vector<1x8x8xf32>
    "tpu.trace_stop"() : () -> ()
    %57 = arith.addf %56, %35 : vector<1x8x8xf32>
    %cst_29 = arith.constant dense<0xFF800000> : vector<1x8xf32>
    %58 = vector.multi_reduction <maximumf>, %57, %cst_29 [2] : vector<1x8x8xf32> to vector<1x8xf32>
    %59 = vector.shape_cast %58 : vector<1x8xf32> to vector<1x8x1xf32>
    %60 = vector.broadcast %59 : vector<1x8x1xf32> to vector<1x8x8xf32>
    %61 = arith.subf %57, %60 : vector<1x8x8xf32>
    %62 = math.exp %61 : vector<1x8x8xf32>
    %cst_30 = arith.constant dense<0.000000e+00> : vector<1x8xf32>
    %63 = vector.multi_reduction <add>, %62, %cst_30 [2] : vector<1x8x8xf32> to vector<1x8xf32>
    %64 = vector.shape_cast %63 : vector<1x8xf32> to vector<1x8x1xf32>
    %65 = tpu.reciprocal %64 {approx = true} : vector<1x8x1xf32> -> vector<1x8x1xf32>
    %66 = vector.broadcast %65 : vector<1x8x1xf32> to vector<1x8x8xf32>
    %67 = arith.mulf %62, %66 : vector<1x8x8xf32>
    %68 = arith.truncf %67 : vector<1x8x8xf32> to vector<1x8x8xbf16>
    "tpu.trace_start"() <{level = 10 : i32, message = "bqk,bkd->bqd"}> : () -> ()
    %cst_31 = arith.constant dense<0.000000e+00> : vector<1x8x16xf32>
    %69 = tpu.matmul %68, %55, %cst_31 {dimension_numbers = #tpu.dot_dimension_numbers<[2], [1], [1], [2], [0, 0, 0, 1, 1, 2], [0], [0]>} : vector<1x8x8xbf16>, vector<1x8x16xbf16>, vector<1x8x16xf32> -> vector<1x8x16xf32>
    "tpu.trace_stop"() : () -> ()
    %70 = vector.extract_strided_slice %28 {offsets = [0, 0, 32], sizes = [1, 8, 16], strides = [1, 1, 1]} : vector<1x8x64xbf16> to vector<1x8x16xbf16>
    %71 = vector.extract_strided_slice %31 {offsets = [0, 0, 32], sizes = [1, 8, 16], strides = [1, 1, 1]} : vector<1x8x64xbf16> to vector<1x8x16xbf16>
    %72 = vector.extract_strided_slice %34 {offsets = [0, 0, 32], sizes = [1, 8, 16], strides = [1, 1, 1]} : vector<1x8x64xbf16> to vector<1x8x16xbf16>
    "tpu.trace_start"() <{level = 10 : i32, message = "bqd,bkd->bqk"}> : () -> ()
    %cst_32 = arith.constant dense<0.000000e+00> : vector<1x8x8xf32>
    %73 = tpu.matmul %70, %71, %cst_32 {dimension_numbers = #tpu.dot_dimension_numbers<[2], [2], [1], [1], [0, 0, 0, 1, 1, 1], [0], [0]>} : vector<1x8x16xbf16>, vector<1x8x16xbf16>, vector<1x8x8xf32> -> vector<1x8x8xf32>
    "tpu.trace_stop"() : () -> ()
    %74 = arith.addf %73, %35 : vector<1x8x8xf32>
    %cst_33 = arith.constant dense<0xFF800000> : vector<1x8xf32>
    %75 = vector.multi_reduction <maximumf>, %74, %cst_33 [2] : vector<1x8x8xf32> to vector<1x8xf32>
    %76 = vector.shape_cast %75 : vector<1x8xf32> to vector<1x8x1xf32>
    %77 = vector.broadcast %76 : vector<1x8x1xf32> to vector<1x8x8xf32>
    %78 = arith.subf %74, %77 : vector<1x8x8xf32>
    %79 = math.exp %78 : vector<1x8x8xf32>
    %cst_34 = arith.constant dense<0.000000e+00> : vector<1x8xf32>
    %80 = vector.multi_reduction <add>, %79, %cst_34 [2] : vector<1x8x8xf32> to vector<1x8xf32>
    %81 = vector.shape_cast %80 : vector<1x8xf32> to vector<1x8x1xf32>
    %82 = tpu.reciprocal %81 {approx = true} : vector<1x8x1xf32> -> vector<1x8x1xf32>
    %83 = vector.broadcast %82 : vector<1x8x1xf32> to vector<1x8x8xf32>
    %84 = arith.mulf %79, %83 : vector<1x8x8xf32>
    %85 = arith.truncf %84 : vector<1x8x8xf32> to vector<1x8x8xbf16>
    "tpu.trace_start"() <{level = 10 : i32, message = "bqk,bkd->bqd"}> : () -> ()
    %cst_35 = arith.constant dense<0.000000e+00> : vector<1x8x16xf32>
    %86 = tpu.matmul %85, %72, %cst_35 {dimension_numbers = #tpu.dot_dimension_numbers<[2], [1], [1], [2], [0, 0, 0, 1, 1, 2], [0], [0]>} : vector<1x8x8xbf16>, vector<1x8x16xbf16>, vector<1x8x16xf32> -> vector<1x8x16xf32>
    "tpu.trace_stop"() : () -> ()
    %87 = vector.extract_strided_slice %28 {offsets = [0, 0, 48], sizes = [1, 8, 16], strides = [1, 1, 1]} : vector<1x8x64xbf16> to vector<1x8x16xbf16>
    %88 = vector.extract_strided_slice %31 {offsets = [0, 0, 48], sizes = [1, 8, 16], strides = [1, 1, 1]} : vector<1x8x64xbf16> to vector<1x8x16xbf16>
    %89 = vector.extract_strided_slice %34 {offsets = [0, 0, 48], sizes = [1, 8, 16], strides = [1, 1, 1]} : vector<1x8x64xbf16> to vector<1x8x16xbf16>
    "tpu.trace_start"() <{level = 10 : i32, message = "bqd,bkd->bqk"}> : () -> ()
    %cst_36 = arith.constant dense<0.000000e+00> : vector<1x8x8xf32>
    %90 = tpu.matmul %87, %88, %cst_36 {dimension_numbers = #tpu.dot_dimension_numbers<[2], [2], [1], [1], [0, 0, 0, 1, 1, 1], [0], [0]>} : vector<1x8x16xbf16>, vector<1x8x16xbf16>, vector<1x8x8xf32> -> vector<1x8x8xf32>
    "tpu.trace_stop"() : () -> ()
    %91 = arith.addf %90, %35 : vector<1x8x8xf32>
    %cst_37 = arith.constant dense<0xFF800000> : vector<1x8xf32>
    %92 = vector.multi_reduction <maximumf>, %91, %cst_37 [2] : vector<1x8x8xf32> to vector<1x8xf32>
    %93 = vector.shape_cast %92 : vector<1x8xf32> to vector<1x8x1xf32>
    %94 = vector.broadcast %93 : vector<1x8x1xf32> to vector<1x8x8xf32>
    %95 = arith.subf %91, %94 : vector<1x8x8xf32>
    %96 = math.exp %95 : vector<1x8x8xf32>
    %cst_38 = arith.constant dense<0.000000e+00> : vector<1x8xf32>
    %97 = vector.multi_reduction <add>, %96, %cst_38 [2] : vector<1x8x8xf32> to vector<1x8xf32>
    %98 = vector.shape_cast %97 : vector<1x8xf32> to vector<1x8x1xf32>
    %99 = tpu.reciprocal %98 {approx = true} : vector<1x8x1xf32> -> vector<1x8x1xf32>
    %100 = vector.broadcast %99 : vector<1x8x1xf32> to vector<1x8x8xf32>
    %101 = arith.mulf %96, %100 : vector<1x8x8xf32>
    %102 = arith.truncf %101 : vector<1x8x8xf32> to vector<1x8x8xbf16>
    "tpu.trace_start"() <{level = 10 : i32, message = "bqk,bkd->bqd"}> : () -> ()
    %cst_39 = arith.constant dense<0.000000e+00> : vector<1x8x16xf32>
    %103 = tpu.matmul %102, %89, %cst_39 {dimension_numbers = #tpu.dot_dimension_numbers<[2], [1], [1], [2], [0, 0, 0, 1, 1, 2], [0], [0]>} : vector<1x8x8xbf16>, vector<1x8x16xbf16>, vector<1x8x16xf32> -> vector<1x8x16xf32>
    "tpu.trace_stop"() : () -> ()
    %104 = vector.shape_cast %50 : vector<1x8x8xf32> to vector<1x1x8x8xf32>
    %105 = vector.shape_cast %67 : vector<1x8x8xf32> to vector<1x1x8x8xf32>
    %106 = vector.shape_cast %84 : vector<1x8x8xf32> to vector<1x1x8x8xf32>
    %107 = vector.shape_cast %101 : vector<1x8x8xf32> to vector<1x1x8x8xf32>
    %108 = tpu.concatenate %104, %105, %106, %107 in 1 : vector<1x1x8x8xf32>, vector<1x1x8x8xf32>, vector<1x1x8x8xf32>, vector<1x1x8x8xf32> -> vector<1x4x8x8xf32>
    %cst_40 = arith.constant 0.000000e+00 : f32
    %109 = vector.broadcast %cst_40 : f32 to vector<8x64xf32>
    %110 = vector.shape_cast %52 : vector<1x8x16xf32> to vector<8x16xf32>
    %111 = arith.truncf %110 : vector<8x16xf32> to vector<8x16xbf16>
    %112 = vector.extract_strided_slice %14 {offsets = [0, 0], sizes = [16, 64], strides = [1, 1]} : vector<64x64xbf16> to vector<16x64xbf16>
    %cst_41 = arith.constant dense<0.000000e+00> : vector<8x64xf32>
    %113 = tpu.matmul %111, %112, %cst_41 {dimension_numbers = #tpu.dot_dimension_numbers<[1], [0], [0], [1], [0, 0, 1, 1], [], []>} : vector<8x16xbf16>, vector<16x64xbf16>, vector<8x64xf32> -> vector<8x64xf32>
    %114 = arith.addf %109, %113 : vector<8x64xf32>
    %115 = vector.shape_cast %69 : vector<1x8x16xf32> to vector<8x16xf32>
    %116 = arith.truncf %115 : vector<8x16xf32> to vector<8x16xbf16>
    %117 = vector.extract_strided_slice %14 {offsets = [16, 0], sizes = [16, 64], strides = [1, 1]} : vector<64x64xbf16> to vector<16x64xbf16>
    %cst_42 = arith.constant dense<0.000000e+00> : vector<8x64xf32>
    %118 = tpu.matmul %116, %117, %cst_42 {dimension_numbers = #tpu.dot_dimension_numbers<[1], [0], [0], [1], [0, 0, 1, 1], [], []>} : vector<8x16xbf16>, vector<16x64xbf16>, vector<8x64xf32> -> vector<8x64xf32>
    %119 = arith.addf %114, %118 : vector<8x64xf32>
    %120 = vector.shape_cast %86 : vector<1x8x16xf32> to vector<8x16xf32>
    %121 = arith.truncf %120 : vector<8x16xf32> to vector<8x16xbf16>
    %122 = vector.extract_strided_slice %14 {offsets = [32, 0], sizes = [16, 64], strides = [1, 1]} : vector<64x64xbf16> to vector<16x64xbf16>
    %cst_43 = arith.constant dense<0.000000e+00> : vector<8x64xf32>
    %123 = tpu.matmul %121, %122, %cst_43 {dimension_numbers = #tpu.dot_dimension_numbers<[1], [0], [0], [1], [0, 0, 1, 1], [], []>} : vector<8x16xbf16>, vector<16x64xbf16>, vector<8x64xf32> -> vector<8x64xf32>
    %124 = arith.addf %119, %123 : vector<8x64xf32>
    %125 = vector.shape_cast %103 : vector<1x8x16xf32> to vector<8x16xf32>
    %126 = arith.truncf %125 : vector<8x16xf32> to vector<8x16xbf16>
    %127 = vector.extract_strided_slice %14 {offsets = [48, 0], sizes = [16, 64], strides = [1, 1]} : vector<64x64xbf16> to vector<16x64xbf16>
    %cst_44 = arith.constant dense<0.000000e+00> : vector<8x64xf32>
    %128 = tpu.matmul %126, %127, %cst_44 {dimension_numbers = #tpu.dot_dimension_numbers<[1], [0], [0], [1], [0, 0, 1, 1], [], []>} : vector<8x16xbf16>, vector<16x64xbf16>, vector<8x64xf32> -> vector<8x64xf32>
    %129 = arith.addf %124, %128 : vector<8x64xf32>
    %130 = vector.broadcast %16 : vector<1x64xf32> to vector<8x64xf32>
    %131 = arith.addf %129, %130 : vector<8x64xf32>
    %132 = vector.shape_cast %131 : vector<8x64xf32> to vector<1x8x64xf32>
    %c0_45 = arith.constant 0 : index
    %c0_46 = arith.constant 0 : index
    %c0_47 = arith.constant 0 : index
    %c0_48 = arith.constant 0 : index
    %c0_49 = arith.constant 0 : index
    %133 = vector.load %arg19[%c0_45, %c0_46, %c0_47, %c0_48, %c0_49] : memref<1x1x4x8x8xf32, #tpu.memory_space<vmem>>, vector<1x1x4x8x8xf32>
    %134 = vector.shape_cast %133 : vector<1x1x4x8x8xf32> to vector<1x4x8x8xf32>
    %135 = vector.shape_cast %108 : vector<1x4x8x8xf32> to vector<1x1x4x8x8xf32>
    tpu.vector_store %arg19[%c0_45, %c0_46, %c0_47, %c0_48, %c0_49], %135 {strides = array<i32>} : memref<1x1x4x8x8xf32, #tpu.memory_space<vmem>>, vector<1x1x4x8x8xf32>,
    %c0_50 = arith.constant 0 : index
    %c0_51 = arith.constant 0 : index
    %c0_52 = arith.constant 0 : index
    %136 = vector.load %arg10[%c0_50, %c0_51, %c0_52] : memref<1x1x64xf32, #tpu.memory_space<vmem>>, vector<1x1x64xf32>
    %137 = vector.shape_cast %136 : vector<1x1x64xf32> to vector<1x64xf32>
    %c0_53 = arith.constant 0 : index
    %c0_54 = arith.constant 0 : index
    %c0_55 = arith.constant 0 : index
    %138 = vector.load %arg11[%c0_53, %c0_54, %c0_55] : memref<1x1x64xf32, #tpu.memory_space<vmem>>, vector<1x1x64xf32>
    %139 = vector.shape_cast %138 : vector<1x1x64xf32> to vector<1x64xf32>
    %140 = arith.addf %3, %132 : vector<1x8x64xf32>
    %cst_56 = arith.constant dense<0.000000e+00> : vector<1x8xf32>
    %141 = vector.multi_reduction <add>, %140, %cst_56 [2] : vector<1x8x64xf32> to vector<1x8xf32>
    %142 = vector.shape_cast %141 : vector<1x8xf32> to vector<1x8x1xf32>
    %cst_57 = arith.constant 6.400000e+01 : f32
    %143 = vector.broadcast %cst_57 : f32 to vector<1x8x1xf32>
    %144 = arith.divf %142, %143 : vector<1x8x1xf32>
    %145 = vector.broadcast %144 : vector<1x8x1xf32> to vector<1x8x64xf32>
    %146 = arith.subf %140, %145 : vector<1x8x64xf32>
    %147 = arith.mulf %146, %146 : vector<1x8x64xf32>
    %cst_58 = arith.constant dense<0.000000e+00> : vector<1x8xf32>
    %148 = vector.multi_reduction <add>, %147, %cst_58 [2] : vector<1x8x64xf32> to vector<1x8xf32>
    %149 = vector.shape_cast %148 : vector<1x8xf32> to vector<1x8x1xf32>
    %cst_59 = arith.constant 6.400000e+01 : f32
    %150 = vector.broadcast %cst_59 : f32 to vector<1x8x1xf32>
    %151 = arith.divf %149, %150 : vector<1x8x1xf32>
    %152 = vector.broadcast %144 : vector<1x8x1xf32> to vector<1x8x64xf32>
    %153 = arith.subf %140, %152 : vector<1x8x64xf32>
    %cst_60 = arith.constant 9.99999974E-6 : f32
    %154 = vector.broadcast %cst_60 : f32 to vector<1x8x1xf32>
    %155 = arith.addf %151, %154 : vector<1x8x1xf32>
    %156 = math.rsqrt %155 : vector<1x8x1xf32>
    %157 = vector.broadcast %156 : vector<1x8x1xf32> to vector<1x8x64xf32>
    %158 = arith.mulf %153, %157 : vector<1x8x64xf32>
    %159 = vector.shape_cast %137 : vector<1x64xf32> to vector<1x1x64xf32>
    %160 = vector.broadcast %159 : vector<1x1x64xf32> to vector<1x8x64xf32>
    %161 = arith.mulf %158, %160 : vector<1x8x64xf32>
    %162 = vector.shape_cast %139 : vector<1x64xf32> to vector<1x1x64xf32>
    %163 = vector.broadcast %162 : vector<1x1x64xf32> to vector<1x8x64xf32>
    %164 = arith.addf %161, %163 : vector<1x8x64xf32>
    %165 = vector.shape_cast %164 : vector<1x8x64xf32> to vector<8x64xf32>
    %c0_61 = arith.constant 0 : index
    %c0_62 = arith.constant 0 : index
    %c0_63 = arith.constant 0 : index
    %166 = vector.load %arg12[%c0_61, %c0_62, %c0_63] : memref<1x64x256xbf16, #tpu.memory_space<vmem>>, vector<1x64x256xbf16>
    %167 = vector.shape_cast %166 : vector<1x64x256xbf16> to vector<64x256xbf16>
    %c0_64 = arith.constant 0 : index
    %c0_65 = arith.constant 0 : index
    %c0_66 = arith.constant 0 : index
    %168 = vector.load %arg13[%c0_64, %c0_65, %c0_66] : memref<1x1x256xf32, #tpu.memory_space<vmem>>, vector<1x1x256xf32>
    %169 = vector.shape_cast %168 : vector<1x1x256xf32> to vector<1x256xf32>
    %c0_67 = arith.constant 0 : index
    %c0_68 = arith.constant 0 : index
    %c0_69 = arith.constant 0 : index
    %170 = vector.load %arg14[%c0_67, %c0_68, %c0_69] : memref<1x256x64xbf16, #tpu.memory_space<vmem>>, vector<1x256x64xbf16>
    %171 = vector.shape_cast %170 : vector<1x256x64xbf16> to vector<256x64xbf16>
    %c0_70 = arith.constant 0 : index
    %c0_71 = arith.constant 0 : index
    %c0_72 = arith.constant 0 : index
    %172 = vector.load %arg15[%c0_70, %c0_71, %c0_72] : memref<1x1x64xf32, #tpu.memory_space<vmem>>, vector<1x1x64xf32>
    %173 = vector.shape_cast %172 : vector<1x1x64xf32> to vector<1x64xf32>
    %174 = arith.truncf %165 : vector<8x64xf32> to vector<8x64xbf16>
    %cst_73 = arith.constant dense<0.000000e+00> : vector<8x256xf32>
    %175 = tpu.matmul %174, %167, %cst_73 {dimension_numbers = #tpu.dot_dimension_numbers<[1], [0], [0], [1], [0, 0, 1, 1], [], []>} : vector<8x64xbf16>, vector<64x256xbf16>, vector<8x256xf32> -> vector<8x256xf32>
    %176 = vector.broadcast %169 : vector<1x256xf32> to vector<8x256xf32>
    %177 = arith.addf %175, %176 : vector<8x256xf32>
    %cst_74 = arith.constant 0.000000e+00 : f32
    %178 = vector.broadcast %cst_74 : f32 to vector<8x256xf32>
    %179 = arith.maximumf %177, %178 : vector<8x256xf32>
    %180 = arith.truncf %179 : vector<8x256xf32> to vector<8x256xbf16>
    %cst_75 = arith.constant dense<0.000000e+00> : vector<8x64xf32>
    %181 = tpu.matmul %180, %171, %cst_75 {dimension_numbers = #tpu.dot_dimension_numbers<[1], [0], [0], [1], [0, 0, 1, 1], [], []>} : vector<8x256xbf16>, vector<256x64xbf16>, vector<8x64xf32> -> vector<8x64xf32>
    %182 = vector.broadcast %173 : vector<1x64xf32> to vector<8x64xf32>
    %183 = arith.addf %181, %182 : vector<8x64xf32>
    %184 = vector.shape_cast %183 : vector<8x64xf32> to vector<1x8x64xf32>
    %c0_76 = arith.constant 0 : index
    %c0_77 = arith.constant 0 : index
    %c0_78 = arith.constant 0 : index
    %185 = vector.load %arg16[%c0_76, %c0_77, %c0_78] : memref<1x1x64xf32, #tpu.memory_space<vmem>>, vector<1x1x64xf32>
    %186 = vector.shape_cast %185 : vector<1x1x64xf32> to vector<1x64xf32>
    %c0_79 = arith.constant 0 : index
    %c0_80 = arith.constant 0 : index
    %c0_81 = arith.constant 0 : index
    %187 = vector.load %arg17[%c0_79, %c0_80, %c0_81] : memref<1x1x64xf32, #tpu.memory_space<vmem>>, vector<1x1x64xf32>
    %188 = vector.shape_cast %187 : vector<1x1x64xf32> to vector<1x64xf32>
    %189 = arith.addf %164, %184 : vector<1x8x64xf32>
    %cst_82 = arith.constant dense<0.000000e+00> : vector<1x8xf32>
    %190 = vector.multi_reduction <add>, %189, %cst_82 [2] : vector<1x8x64xf32> to vector<1x8xf32>
    %191 = vector.shape_cast %190 : vector<1x8xf32> to vector<1x8x1xf32>
    %cst_83 = arith.constant 6.400000e+01 : f32
    %192 = vector.broadcast %cst_83 : f32 to vector<1x8x1xf32>
    %193 = arith.divf %191, %192 : vector<1x8x1xf32>
    %194 = vector.broadcast %193 : vector<1x8x1xf32> to vector<1x8x64xf32>
    %195 = arith.subf %189, %194 : vector<1x8x64xf32>
    %196 = arith.mulf %195, %195 : vector<1x8x64xf32>
    %cst_84 = arith.constant dense<0.000000e+00> : vector<1x8xf32>
    %197 = vector.multi_reduction <add>, %196, %cst_84 [2] : vector<1x8x64xf32> to vector<1x8xf32>
    %198 = vector.shape_cast %197 : vector<1x8xf32> to vector<1x8x1xf32>
    %cst_85 = arith.constant 6.400000e+01 : f32
    %199 = vector.broadcast %cst_85 : f32 to vector<1x8x1xf32>
    %200 = arith.divf %198, %199 : vector<1x8x1xf32>
    %201 = vector.broadcast %193 : vector<1x8x1xf32> to vector<1x8x64xf32>
    %202 = arith.subf %189, %201 : vector<1x8x64xf32>
    %cst_86 = arith.constant 9.99999974E-6 : f32
    %203 = vector.broadcast %cst_86 : f32 to vector<1x8x1xf32>
    %204 = arith.addf %200, %203 : vector<1x8x1xf32>
    %205 = math.rsqrt %204 : vector<1x8x1xf32>
    %206 = vector.broadcast %205 : vector<1x8x1xf32> to vector<1x8x64xf32>
    %207 = arith.mulf %202, %206 : vector<1x8x64xf32>
    %208 = vector.shape_cast %186 : vector<1x64xf32> to vector<1x1x64xf32>
    %209 = vector.broadcast %208 : vector<1x1x64xf32> to vector<1x8x64xf32>
    %210 = arith.mulf %207, %209 : vector<1x8x64xf32>
    %211 = vector.shape_cast %188 : vector<1x64xf32> to vector<1x1x64xf32>
    %212 = vector.broadcast %211 : vector<1x1x64xf32> to vector<1x8x64xf32>
    %213 = arith.addf %210, %212 : vector<1x8x64xf32>
    %c0_87 = arith.constant 0 : index
    %c0_88 = arith.constant 0 : index
    %c0_89 = arith.constant 0 : index
    %214 = vector.load %arg18[%c0_87, %c0_88, %c0_89] : memref<1x8x64xf32, #tpu.memory_space<vmem>>, vector<1x8x64xf32>
    tpu.vector_store %arg18[%c0_87, %c0_88, %c0_89], %213 {strides = array<i32>} : memref<1x8x64xf32, #tpu.memory_space<vmem>>, vector<1x8x64xf32>,
    return
  }
  func.func @transform_0(%arg0: i32, %arg1: i32) -> (i32, i32, i32) {
    %c0_i32 = arith.constant 0 : i32
    %c0_i32_0 = arith.constant 0 : i32
    %c0_i32_1 = arith.constant 0 : i32
    return %arg0, %c0_i32, %c0_i32_0 : i32, i32, i32
  }
  func.func @transform_1(%arg0: i32, %arg1: i32) -> (i32, i32) {
    %c0_i32 = arith.constant 0 : i32
    %c0_i32_0 = arith.constant 0 : i32
    %c0_i32_1 = arith.constant 0 : i32
    return %c0_i32, %c0_i32_0 : i32, i32
  }
  func.func @transform_2(%arg0: i32, %arg1: i32) -> (i32, i32, i32) {
    %c0_i32 = arith.constant 0 : i32
    %c0_i32_0 = arith.constant 0 : i32
    %c0_i32_1 = arith.constant 0 : i32
    return %arg1, %c0_i32, %c0_i32_0 : i32, i32, i32
  }
  func.func @transform_3(%arg0: i32, %arg1: i32) -> (i32, i32, i32) {
    %c0_i32 = arith.constant 0 : i32
    %c0_i32_0 = arith.constant 0 : i32
    %c0_i32_1 = arith.constant 0 : i32
    return %arg1, %c0_i32, %c0_i32_0 : i32, i32, i32
  }
  func.func @transform_4(%arg0: i32, %arg1: i32) -> (i32, i32, i32) {
    %c0_i32 = arith.constant 0 : i32
    %c0_i32_0 = arith.constant 0 : i32
    %c0_i32_1 = arith.constant 0 : i32
    return %arg1, %c0_i32, %c0_i32_0 : i32, i32, i32
  }
  func.func @transform_5(%arg0: i32, %arg1: i32) -> (i32, i32, i32) {
    %c0_i32 = arith.constant 0 : i32
    %c0_i32_0 = arith.constant 0 : i32
    %c0_i32_1 = arith.constant 0 : i32
    return %arg1, %c0_i32, %c0_i32_0 : i32, i32, i32
  }
  func.func @transform_6(%arg0: i32, %arg1: i32) -> (i32, i32, i32) {
    %c0_i32 = arith.constant 0 : i32
    %c0_i32_0 = arith.constant 0 : i32
    %c0_i32_1 = arith.constant 0 : i32
    return %arg1, %c0_i32, %c0_i32_0 : i32, i32, i32
  }
  func.func @transform_7(%arg0: i32, %arg1: i32) -> (i32, i32, i32) {
    %c0_i32 = arith.constant 0 : i32
    %c0_i32_0 = arith.constant 0 : i32
    %c0_i32_1 = arith.constant 0 : i32
    return %arg1, %c0_i32, %c0_i32_0 : i32, i32, i32
  }
  func.func @transform_8(%arg0: i32, %arg1: i32) -> (i32, i32, i32) {
    %c0_i32 = arith.constant 0 : i32
    %c0_i32_0 = arith.constant 0 : i32
    %c0_i32_1 = arith.constant 0 : i32
    return %arg1, %c0_i32, %c0_i32_0 : i32, i32, i32
  }
  func.func @transform_9(%arg0: i32, %arg1: i32) -> (i32, i32, i32) {
    %c0_i32 = arith.constant 0 : i32
    %c0_i32_0 = arith.constant 0 : i32
    %c0_i32_1 = arith.constant 0 : i32
    return %arg1, %c0_i32, %c0_i32_0 : i32, i32, i32
  }
  func.func @transform_10(%arg0: i32, %arg1: i32) -> (i32, i32, i32) {
    %c0_i32 = arith.constant 0 : i32
    %c0_i32_0 = arith.constant 0 : i32
    %c0_i32_1 = arith.constant 0 : i32
    return %arg1, %c0_i32, %c0_i32_0 : i32, i32, i32
  }
  func.func @transform_11(%arg0: i32, %arg1: i32) -> (i32, i32, i32) {
    %c0_i32 = arith.constant 0 : i32
    %c0_i32_0 = arith.constant 0 : i32
    %c0_i32_1 = arith.constant 0 : i32
    return %arg1, %c0_i32, %c0_i32_0 : i32, i32, i32
  }
  func.func @transform_12(%arg0: i32, %arg1: i32) -> (i32, i32, i32) {
    %c0_i32 = arith.constant 0 : i32
    %c0_i32_0 = arith.constant 0 : i32
    %c0_i32_1 = arith.constant 0 : i32
    return %arg1, %c0_i32, %c0_i32_0 : i32, i32, i32
  }
  func.func @transform_13(%arg0: i32, %arg1: i32) -> (i32, i32, i32) {
    %c0_i32 = arith.constant 0 : i32
    %c0_i32_0 = arith.constant 0 : i32
    %c0_i32_1 = arith.constant 0 : i32
    return %arg1, %c0_i32, %c0_i32_0 : i32, i32, i32
  }
  func.func @transform_14(%arg0: i32, %arg1: i32) -> (i32, i32, i32) {
    %c0_i32 = arith.constant 0 : i32
    %c0_i32_0 = arith.constant 0 : i32
    %c0_i32_1 = arith.constant 0 : i32
    return %arg1, %c0_i32, %c0_i32_0 : i32, i32, i32
  }
  func.func @transform_15(%arg0: i32, %arg1: i32) -> (i32, i32, i32) {
    %c0_i32 = arith.constant 0 : i32
    %c0_i32_0 = arith.constant 0 : i32
    %c0_i32_1 = arith.constant 0 : i32
    return %arg1, %c0_i32, %c0_i32_0 : i32, i32, i32
  }
  func.func @transform_16(%arg0: i32, %arg1: i32) -> (i32, i32, i32) {
    %c0_i32 = arith.constant 0 : i32
    %c0_i32_0 = arith.constant 0 : i32
    %c0_i32_1 = arith.constant 0 : i32
    return %arg0, %c0_i32, %c0_i32_0 : i32, i32, i32
  }
  func.func @transform_17(%arg0: i32, %arg1: i32) -> (i32, i32, i32, i32, i32) {
    %c0_i32 = arith.constant 0 : i32
    %c0_i32_0 = arith.constant 0 : i32
    %c0_i32_1 = arith.constant 0 : i32
    %c0_i32_2 = arith.constant 0 : i32
    return %arg1, %arg0, %c0_i32, %c0_i32_0, %c0_i32_1 : i32, i32, i32, i32, i32
  }
}

</mosaic_0001>

<llo_original>
// kernel: tpu_custom_call.1
$region0: #{tpu_custom_call.1}
  #allocation0 [shape = 'u32[]', space=smem, size = 0x4, offset = 0x4, fixed_abs, tag = 'smem constant byte address 0x4 - core index']
  #allocation1 [shape = 'u32[144,128]{1,0:T(1,128)}', space=vmem, size = 0x12000, scoped, tag = 'internal scratch']
  %s0 = inlined_call_operand.vmem [shape: f32[2,8,64], index: 0, kind: input, shape index: {}]
  %s1 = inlined_call_operand.vmem [shape: f32[8,8], index: 1, kind: input, shape index: {}]
  %s2 = inlined_call_operand.vmem [shape: bf16[2,64,64], index: 2, kind: input, shape index: {}]
  %s3 = inlined_call_operand.vmem [shape: f32[2,1,64], index: 3, kind: input, shape index: {}]
  %s4 = inlined_call_operand.vmem [shape: bf16[2,64,128], index: 4, kind: input, shape index: {}]
  %s5 = inlined_call_operand.vmem [shape: f32[2,1,128], index: 5, kind: input, shape index: {}]
  %s6 = inlined_call_operand.vmem [shape: bf16[2,64,64], index: 6, kind: input, shape index: {}]
  %s7 = inlined_call_operand.vmem [shape: f32[2,1,64], index: 7, kind: input, shape index: {}]
  %s8 = inlined_call_operand.vmem [shape: f32[2,1,64], index: 8, kind: input, shape index: {}]
  %s9 = inlined_call_operand.vmem [shape: f32[2,1,64], index: 9, kind: input, shape index: {}]
  %s10 = inlined_call_operand.vmem [shape: bf16[2,64,256], index: 10, kind: input, shape index: {}]
  %s11 = inlined_call_operand.vmem [shape: f32[2,1,256], index: 11, kind: input, shape index: {}]
  %s12 = inlined_call_operand.vmem [shape: bf16[2,256,64], index: 12, kind: input, shape index: {}]
  %s13 = inlined_call_operand.vmem [shape: f32[2,1,64], index: 13, kind: input, shape index: {}]
  %s14 = inlined_call_operand.vmem [shape: f32[2,1,64], index: 14, kind: input, shape index: {}]
  %s15 = inlined_call_operand.vmem [shape: f32[2,1,64], index: 15, kind: input, shape index: {}]
  %s16 = inlined_call_operand.hbm [shape: f32[2,8,64], index: 16, kind: output, shape index: {0}]
  %s17 = inlined_call_operand.hbm [shape: f32[2,2,4,8,8], index: 17, kind: output, shape index: {1}]
  %18 = xla_tuple %s16, %s17
  %s19 = sld [smem:[#allocation0]]
  $region109: #{tpu_custom_call.1} parent=0
    _
  %s21 = ssub.s32 1, %s19
  %s22 = scalar_select 0, %s21, %s19
  $region1: #{tpu_custom_call.1} parent=0
    #allocation2 [shape = 'u8[8192]{0}', space=vmem, size = 0x2000, scoped, tag = 'output window, operand 0']
    #allocation3 [shape = 's32[2]{0}', space=sflag, size = 0x8, scoped, tag = 'scoped memory for tpu_custom_call.1']
    #allocation4 [shape = 'u8[32768]{0}', space=vmem, size = 0x8000, scoped, tag = 'output window, operand 1']
    #allocation5 [shape = 's32[2]{0}', space=sflag, size = 0x8, scoped, tag = 'scoped memory for tpu_custom_call.1']
    %23 = vsyncpa [#allocation3], 0
    %s24 = scalar_lea.sflag [#allocation3], 1
    %25 = vsyncpa %s24, 0
    %26 = vsyncpa [#allocation5], 0
    %s27 = scalar_lea.sflag [#allocation5], 1
    %28 = vsyncpa %s27, 0
    loop: start=0, step=1, limit=6
    $region2: #{tpu_custom_call.1} parent=1 // loop_pre_header
      _
    $region3: #{tpu_custom_call.1} parent=1 // loop_header
      %s30 = sphi 0, %s34
      %p31 = scmp.ge.s32.totalorder %s30, 6
      %s37 = sphi 0, %s49
      %s38 = sphi 0, %s45
      %s39 = sphi 0, %s37
      %s40 = sphi 0, %s38
      %s41 = sphi 0, %s39
      %s42 = sphi 0, %s40
      %s52 = sphi 0, %s54
      %s55 = sphi 0, %s52
      %s56 = sphi 0, %s55
      %s72 = sphi 0, %s56
      %s76 = sphi 0, %s76
      %s78 = sphi 0, %s76
      %s79 = sphi 0, %s78
      %s93 = sphi 0, %s79
      %s99 = sphi 0, %s101
      %s102 = sphi 0, %s99
      %s103 = sphi 0, %s102
      %s119 = sphi 0, %s103
      %s125 = sphi 0, %s127
      %s128 = sphi 0, %s125
      %s129 = sphi 0, %s128
      %s145 = sphi 0, %s129
      %s151 = sphi 0, %s153
      %s154 = sphi 0, %s151
      %s155 = sphi 0, %s154
      %s171 = sphi 0, %s155
      %s177 = sphi 0, %s179
      %s180 = sphi 0, %s177
      %s181 = sphi 0, %s180
      %s197 = sphi 0, %s181
      %s203 = sphi 0, %s205
      %s206 = sphi 0, %s203
      %s207 = sphi 0, %s206
      %s223 = sphi 0, %s207
      %s229 = sphi 0, %s231
      %s232 = sphi 0, %s229
      %s233 = sphi 0, %s232
      %s249 = sphi 0, %s233
      %s255 = sphi 0, %s257
      %s258 = sphi 0, %s255
      %s259 = sphi 0, %s258
      %s275 = sphi 0, %s259
      %s281 = sphi 0, %s283
      %s284 = sphi 0, %s281
      %s285 = sphi 0, %s284
      %s301 = sphi 0, %s285
      %s307 = sphi 0, %s309
      %s310 = sphi 0, %s307
      %s311 = sphi 0, %s310
      %s327 = sphi 0, %s311
      %s333 = sphi 0, %s335
      %s336 = sphi 0, %s333
      %s337 = sphi 0, %s336
      %s353 = sphi 0, %s337
      %s359 = sphi 0, %s361
      %s362 = sphi 0, %s359
      %s363 = sphi 0, %s362
      %s379 = sphi 0, %s363
      %s385 = sphi 0, %s387
      %s388 = sphi 0, %s385
      %s389 = sphi 0, %s388
      %s405 = sphi 0, %s389
      %s411 = sphi 0, %s413
      %s414 = sphi 0, %s411
      %s415 = sphi 0, %s414
      %s431 = sphi 0, %s415
      %s437 = sphi 0, %s439
      %s440 = sphi 0, %s437
      %s441 = sphi 0, %s440
      %s457 = sphi 0, %s441
      %s463 = sphi 0, %s465
      %s466 = sphi 0, %s463
      %s467 = sphi 0, %s466
      %s483 = sphi 0, %s467
      %s491 = sphi 0, %s493
      %s494 = sphi 0, %s491
      %s495 = sphi 0, %s494
      %s511 = sphi 0, %s495
    $region4: #{tpu_custom_call.1} parent=1 // loop_header_branch
      %33 = sbr.rel (%p31) target = $region8
    $region5: #{tpu_custom_call.1} parent=1 // loop_body
      %s35 = ssub.s32 %s30, 1
      %s36 = ssub.s32 %s30, 2
      %s43 = sadd.s32 1, %s38
      %p44 = scmp.ge.s32.totalorder %s43, 2
      %s45 = scalar_select %p44, 0, %s43
      %s46 = sadd.s32 1, %s37
      %s47 = scalar_select %p44, %s46, %s37
      %p48 = scmp.ge.s32.totalorder %s47, 2
      %s49 = scalar_select %p48, 0, %s47
      %s50 = ssub.s32 %s37, %s49
      %p51 = scmp.eq.s32.totalorder %s50, 0
      %s53 = sadd.s32 %s52, 1
      %s54 = scalar_select %p51, %s52, %s53
      %p57 = pneg %p51
      %p58 = scmp.eq.s32.totalorder %s30, 3
      %p59 = por %p57, %p58
      %p60 = scmp.ne.s32.totalorder %s52, %s55
      %p61 = scmp.eq.s32.totalorder %s30, 0
      %p62 = por %p60, %p61
      %p63 = scmp.ne.s32.totalorder %s52, %s55
      %p64 = scmp.eq.s32.totalorder %s35, 3
      %p65 = por %p63, %p64
      %p66 = scmp.ne.s32.totalorder %s55, %s56
      %p67 = scmp.eq.s32.totalorder %s35, 0
      %p68 = por %p66, %p67
      %p69 = scmp.ne.s32.totalorder %s55, %s56
      %p70 = scmp.eq.s32.totalorder %s36, 3
      %p71 = por %p69, %p70
      %p73 = scmp.ne.s32.totalorder %s56, %s72
      %p74 = scmp.eq.s32.totalorder %s36, 0
      %p75 = por %p73, %p74
      %s77 = sadd.s32 %s76, 1
      %p80 = scmp.eq.s32.totalorder %s30, 3
      %p81 = scmp.ne.s32.totalorder %s76, %s78
      %p82 = scmp.eq.s32.totalorder %s30, 0
      %p83 = por %p81, %p82
      %p84 = scmp.ne.s32.totalorder %s76, %s78
      %p85 = scmp.eq.s32.totalorder %s35, 3
      %p86 = por %p84, %p85
      %p87 = scmp.ne.s32.totalorder %s78, %s79
      %p88 = scmp.eq.s32.totalorder %s35, 0
      %p89 = por %p87, %p88
      %p90 = scmp.ne.s32.totalorder %s78, %s79
      %p91 = scmp.eq.s32.totalorder %s36, 3
      %p92 = por %p90, %p91
      %p94 = scmp.ne.s32.totalorder %s79, %s93
      %p95 = scmp.eq.s32.totalorder %s36, 0
      %p96 = por %p94, %p95
      %s97 = ssub.s32 %s38, %s45
      %p98 = scmp.eq.s32.totalorder %s97, 0
      %s100 = sadd.s32 %s99, 1
      %s101 = scalar_select %p98, %s99, %s100
      %p104 = pneg %p98
      %p105 = scmp.eq.s32.totalorder %s30, 3
      %p106 = por %p104, %p105
      %p107 = scmp.ne.s32.totalorder %s99, %s102
      %p108 = scmp.eq.s32.totalorder %s30, 0
      %p109 = por %p107, %p108
      %p110 = scmp.ne.s32.totalorder %s99, %s102
      %p111 = scmp.eq.s32.totalorder %s35, 3
      %p112 = por %p110, %p111
      %p113 = scmp.ne.s32.totalorder %s102, %s103
      %p114 = scmp.eq.s32.totalorder %s35, 0
      %p115 = por %p113, %p114
      %p116 = scmp.ne.s32.totalorder %s102, %s103
      %p117 = scmp.eq.s32.totalorder %s36, 3
      %p118 = por %p116, %p117
      %p120 = scmp.ne.s32.totalorder %s103, %s119
      %p121 = scmp.eq.s32.totalorder %s36, 0
      %p122 = por %p120, %p121
      %s123 = ssub.s32 %s38, %s45
      %p124 = scmp.eq.s32.totalorder %s123, 0
      %s126 = sadd.s32 %s125, 1
      %s127 = scalar_select %p124, %s125, %s126
      %p130 = pneg %p124
      %p131 = scmp.eq.s32.totalorder %s30, 3
      %p132 = por %p130, %p131
      %p133 = scmp.ne.s32.totalorder %s125, %s128
      %p134 = scmp.eq.s32.totalorder %s30, 0
      %p135 = por %p133, %p134
      %p136 = scmp.ne.s32.totalorder %s125, %s128
      %p137 = scmp.eq.s32.totalorder %s35, 3
      %p138 = por %p136, %p137
      %p139 = scmp.ne.s32.totalorder %s128, %s129
      %p140 = scmp.eq.s32.totalorder %s35, 0
      %p141 = por %p139, %p140
      %p142 = scmp.ne.s32.totalorder %s128, %s129
      %p143 = scmp.eq.s32.totalorder %s36, 3
      %p144 = por %p142, %p143
      %p146 = scmp.ne.s32.totalorder %s129, %s145
      %p147 = scmp.eq.s32.totalorder %s36, 0
      %p148 = por %p146, %p147
      %s149 = ssub.s32 %s38, %s45
      %p150 = scmp.eq.s32.totalorder %s149, 0
      %s152 = sadd.s32 %s151, 1
      %s153 = scalar_select %p150, %s151, %s152
      %p156 = pneg %p150
      %p157 = scmp.eq.s32.totalorder %s30, 3
      %p158 = por %p156, %p157
      %p159 = scmp.ne.s32.totalorder %s151, %s154
      %p160 = scmp.eq.s32.totalorder %s30, 0
      %p161 = por %p159, %p160
      %p162 = scmp.ne.s32.totalorder %s151, %s154
      %p163 = scmp.eq.s32.totalorder %s35, 3
      %p164 = por %p162, %p163
      %p165 = scmp.ne.s32.totalorder %s154, %s155
      %p166 = scmp.eq.s32.totalorder %s35, 0
      %p167 = por %p165, %p166
      %p168 = scmp.ne.s32.totalorder %s154, %s155
      %p169 = scmp.eq.s32.totalorder %s36, 3
      %p170 = por %p168, %p169
      %p172 = scmp.ne.s32.totalorder %s155, %s171
      %p173 = scmp.eq.s32.totalorder %s36, 0
      %p174 = por %p172, %p173
      %s175 = ssub.s32 %s38, %s45
      %p176 = scmp.eq.s32.totalorder %s175, 0
      %s178 = sadd.s32 %s177, 1
      %s179 = scalar_select %p176, %s177, %s178
      %p182 = pneg %p176
      %p183 = scmp.eq.s32.totalorder %s30, 3
      %p184 = por %p182, %p183
      %p185 = scmp.ne.s32.totalorder %s177, %s180
      %p186 = scmp.eq.s32.totalorder %s30, 0
      %p187 = por %p185, %p186
      %p188 = scmp.ne.s32.totalorder %s177, %s180
      %p189 = scmp.eq.s32.totalorder %s35, 3
      %p190 = por %p188, %p189
      %p191 = scmp.ne.s32.totalorder %s180, %s181
      %p192 = scmp.eq.s32.totalorder %s35, 0
      %p193 = por %p191, %p192
      %p194 = scmp.ne.s32.totalorder %s180, %s181
      %p195 = scmp.eq.s32.totalorder %s36, 3
      %p196 = por %p194, %p195
      %p198 = scmp.ne.s32.totalorder %s181, %s197
      %p199 = scmp.eq.s32.totalorder %s36, 0
      %p200 = por %p198, %p199
      %s201 = ssub.s32 %s38, %s45
      %p202 = scmp.eq.s32.totalorder %s201, 0
      %s204 = sadd.s32 %s203, 1
      %s205 = scalar_select %p202, %s203, %s204
      %p208 = pneg %p202
      %p209 = scmp.eq.s32.totalorder %s30, 3
      %p210 = por %p208, %p209
      %p211 = scmp.ne.s32.totalorder %s203, %s206
      %p212 = scmp.eq.s32.totalorder %s30, 0
      %p213 = por %p211, %p212
      %p214 = scmp.ne.s32.totalorder %s203, %s206
      %p215 = scmp.eq.s32.totalorder %s35, 3
      %p216 = por %p214, %p215
      %p217 = scmp.ne.s32.totalorder %s206, %s207
      %p218 = scmp.eq.s32.totalorder %s35, 0
      %p219 = por %p217, %p218
      %p220 = scmp.ne.s32.totalorder %s206, %s207
      %p221 = scmp.eq.s32.totalorder %s36, 3
      %p222 = por %p220, %p221
      %p224 = scmp.ne.s32.totalorder %s207, %s223
      %p225 = scmp.eq.s32.totalorder %s36, 0
      %p226 = por %p224, %p225
      %s227 = ssub.s32 %s38, %s45
      %p228 = scmp.eq.s32.totalorder %s227, 0
      %s230 = sadd.s32 %s229, 1
      %s231 = scalar_select %p228, %s229, %s230
      %p234 = pneg %p228
      %p235 = scmp.eq.s32.totalorder %s30, 3
      %p236 = por %p234, %p235
      %p237 = scmp.ne.s32.totalorder %s229, %s232
      %p238 = scmp.eq.s32.totalorder %s30, 0
      %p239 = por %p237, %p238
      %p240 = scmp.ne.s32.totalorder %s229, %s232
      %p241 = scmp.eq.s32.totalorder %s35, 3
      %p242 = por %p240, %p241
      %p243 = scmp.ne.s32.totalorder %s232, %s233
      %p244 = scmp.eq.s32.totalorder %s35, 0
      %p245 = por %p243, %p244
      %p246 = scmp.ne.s32.totalorder %s232, %s233
      %p247 = scmp.eq.s32.totalorder %s36, 3
      %p248 = por %p246, %p247
      %p250 = scmp.ne.s32.totalorder %s233, %s249
      %p251 = scmp.eq.s32.totalorder %s36, 0
      %p252 = por %p250, %p251
      %s253 = ssub.s32 %s38, %s45
      %p254 = scmp.eq.s32.totalorder %s253, 0
      %s256 = sadd.s32 %s255, 1
      %s257 = scalar_select %p254, %s255, %s256
      %p260 = pneg %p254
      %p261 = scmp.eq.s32.totalorder %s30, 3
      %p262 = por %p260, %p261
      %p263 = scmp.ne.s32.totalorder %s255, %s258
      %p264 = scmp.eq.s32.totalorder %s30, 0
      %p265 = por %p263, %p264
      %p266 = scmp.ne.s32.totalorder %s255, %s258
      %p267 = scmp.eq.s32.totalorder %s35, 3
      %p268 = por %p266, %p267
      %p269 = scmp.ne.s32.totalorder %s258, %s259
      %p270 = scmp.eq.s32.totalorder %s35, 0
      %p271 = por %p269, %p270
      %p272 = scmp.ne.s32.totalorder %s258, %s259
      %p273 = scmp.eq.s32.totalorder %s36, 3
      %p274 = por %p272, %p273
      %p276 = scmp.ne.s32.totalorder %s259, %s275
      %p277 = scmp.eq.s32.totalorder %s36, 0
      %p278 = por %p276, %p277
      %s279 = ssub.s32 %s38, %s45
      %p280 = scmp.eq.s32.totalorder %s279, 0
      %s282 = sadd.s32 %s281, 1
      %s283 = scalar_select %p280, %s281, %s282
      %p286 = pneg %p280
      %p287 = scmp.eq.s32.totalorder %s30, 3
      %p288 = por %p286, %p287
      %p289 = scmp.ne.s32.totalorder %s281, %s284
      %p290 = scmp.eq.s32.totalorder %s30, 0
      %p291 = por %p289, %p290
      %p292 = scmp.ne.s32.totalorder %s281, %s284
      %p293 = scmp.eq.s32.totalorder %s35, 3
      %p294 = por %p292, %p293
      %p295 = scmp.ne.s32.totalorder %s284, %s285
      %p296 = scmp.eq.s32.totalorder %s35, 0
      %p297 = por %p295, %p296
      %p298 = scmp.ne.s32.totalorder %s284, %s285
      %p299 = scmp.eq.s32.totalorder %s36, 3
      %p300 = por %p298, %p299
      %p302 = scmp.ne.s32.totalorder %s285, %s301
      %p303 = scmp.eq.s32.totalorder %s36, 0
      %p304 = por %p302, %p303
      %s305 = ssub.s32 %s38, %s45
      %p306 = scmp.eq.s32.totalorder %s305, 0
      %s308 = sadd.s32 %s307, 1
      %s309 = scalar_select %p306, %s307, %s308
      %p312 = pneg %p306
      %p313 = scmp.eq.s32.totalorder %s30, 3
      %p314 = por %p312, %p313
      %p315 = scmp.ne.s32.totalorder %s307, %s310
      %p316 = scmp.eq.s32.totalorder %s30, 0
      %p317 = por %p315, %p316
      %p318 = scmp.ne.s32.totalorder %s307, %s310
      %p319 = scmp.eq.s32.totalorder %s35, 3
      %p320 = por %p318, %p319
      %p321 = scmp.ne.s32.totalorder %s310, %s311
      %p322 = scmp.eq.s32.totalorder %s35, 0
      %p323 = por %p321, %p322
      %p324 = scmp.ne.s32.totalorder %s310, %s311
      %p325 = scmp.eq.s32.totalorder %s36, 3
      %p326 = por %p324, %p325
      %p328 = scmp.ne.s32.totalorder %s311, %s327
      %p329 = scmp.eq.s32.totalorder %s36, 0
      %p330 = por %p328, %p329
      %s331 = ssub.s32 %s38, %s45
      %p332 = scmp.eq.s32.totalorder %s331, 0
      %s334 = sadd.s32 %s333, 1
      %s335 = scalar_select %p332, %s333, %s334
      %p338 = pneg %p332
      %p339 = scmp.eq.s32.totalorder %s30, 3
      %p340 = por %p338, %p339
      %p341 = scmp.ne.s32.totalorder %s333, %s336
      %p342 = scmp.eq.s32.totalorder %s30, 0
      %p343 = por %p341, %p342
      %p344 = scmp.ne.s32.totalorder %s333, %s336
      %p345 = scmp.eq.s32.totalorder %s35, 3
      %p346 = por %p344, %p345
      %p347 = scmp.ne.s32.totalorder %s336, %s337
      %p348 = scmp.eq.s32.totalorder %s35, 0
      %p349 = por %p347, %p348
      %p350 = scmp.ne.s32.totalorder %s336, %s337
      %p351 = scmp.eq.s32.totalorder %s36, 3
      %p352 = por %p350, %p351
      %p354 = scmp.ne.s32.totalorder %s337, %s353
      %p355 = scmp.eq.s32.totalorder %s36, 0
      %p356 = por %p354, %p355
      %s357 = ssub.s32 %s38, %s45
      %p358 = scmp.eq.s32.totalorder %s357, 0
      %s360 = sadd.s32 %s359, 1
      %s361 = scalar_select %p358, %s359, %s360
      %p364 = pneg %p358
      %p365 = scmp.eq.s32.totalorder %s30, 3
      %p366 = por %p364, %p365
      %p367 = scmp.ne.s32.totalorder %s359, %s362
      %p368 = scmp.eq.s32.totalorder %s30, 0
      %p369 = por %p367, %p368
      %p370 = scmp.ne.s32.totalorder %s359, %s362
      %p371 = scmp.eq.s32.totalorder %s35, 3
      %p372 = por %p370, %p371
      %p373 = scmp.ne.s32.totalorder %s362, %s363
      %p374 = scmp.eq.s32.totalorder %s35, 0
      %p375 = por %p373, %p374
      %p376 = scmp.ne.s32.totalorder %s362, %s363
      %p377 = scmp.eq.s32.totalorder %s36, 3
      %p378 = por %p376, %p377
      %p380 = scmp.ne.s32.totalorder %s363, %s379
      %p381 = scmp.eq.s32.totalorder %s36, 0
      %p382 = por %p380, %p381
      %s383 = ssub.s32 %s38, %s45
      %p384 = scmp.eq.s32.totalorder %s383, 0
      %s386 = sadd.s32 %s385, 1
      %s387 = scalar_select %p384, %s385, %s386
      %p390 = pneg %p384
      %p391 = scmp.eq.s32.totalorder %s30, 3
      %p392 = por %p390, %p391
      %p393 = scmp.ne.s32.totalorder %s385, %s388
      %p394 = scmp.eq.s32.totalorder %s30, 0
      %p395 = por %p393, %p394
      %p396 = scmp.ne.s32.totalorder %s385, %s388
      %p397 = scmp.eq.s32.totalorder %s35, 3
      %p398 = por %p396, %p397
      %p399 = scmp.ne.s32.totalorder %s388, %s389
      %p400 = scmp.eq.s32.totalorder %s35, 0
      %p401 = por %p399, %p400
      %p402 = scmp.ne.s32.totalorder %s388, %s389
      %p403 = scmp.eq.s32.totalorder %s36, 3
      %p404 = por %p402, %p403
      %p406 = scmp.ne.s32.totalorder %s389, %s405
      %p407 = scmp.eq.s32.totalorder %s36, 0
      %p408 = por %p406, %p407
      %s409 = ssub.s32 %s38, %s45
      %p410 = scmp.eq.s32.totalorder %s409, 0
      %s412 = sadd.s32 %s411, 1
      %s413 = scalar_select %p410, %s411, %s412
      %p416 = pneg %p410
      %p417 = scmp.eq.s32.totalorder %s30, 3
      %p418 = por %p416, %p417
      %p419 = scmp.ne.s32.totalorder %s411, %s414
      %p420 = scmp.eq.s32.totalorder %s30, 0
      %p421 = por %p419, %p420
      %p422 = scmp.ne.s32.totalorder %s411, %s414
      %p423 = scmp.eq.s32.totalorder %s35, 3
      %p424 = por %p422, %p423
      %p425 = scmp.ne.s32.totalorder %s414, %s415
      %p426 = scmp.eq.s32.totalorder %s35, 0
      %p427 = por %p425, %p426
      %p428 = scmp.ne.s32.totalorder %s414, %s415
      %p429 = scmp.eq.s32.totalorder %s36, 3
      %p430 = por %p428, %p429
      %p432 = scmp.ne.s32.totalorder %s415, %s431
      %p433 = scmp.eq.s32.totalorder %s36, 0
      %p434 = por %p432, %p433
      %s435 = ssub.s32 %s38, %s45
      %p436 = scmp.eq.s32.totalorder %s435, 0
      %s438 = sadd.s32 %s437, 1
      %s439 = scalar_select %p436, %s437, %s438
      %p442 = pneg %p436
      %p443 = scmp.eq.s32.totalorder %s30, 3
      %p444 = por %p442, %p443
      %p445 = scmp.ne.s32.totalorder %s437, %s440
      %p446 = scmp.eq.s32.totalorder %s30, 0
      %p447 = por %p445, %p446
      %p448 = scmp.ne.s32.totalorder %s437, %s440
      %p449 = scmp.eq.s32.totalorder %s35, 3
      %p450 = por %p448, %p449
      %p451 = scmp.ne.s32.totalorder %s440, %s441
      %p452 = scmp.eq.s32.totalorder %s35, 0
      %p453 = por %p451, %p452
      %p454 = scmp.ne.s32.totalorder %s440, %s441
      %p455 = scmp.eq.s32.totalorder %s36, 3
      %p456 = por %p454, %p455
      %p458 = scmp.ne.s32.totalorder %s441, %s457
      %p459 = scmp.eq.s32.totalorder %s36, 0
      %p460 = por %p458, %p459
      %s461 = ssub.s32 %s37, %s49
      %p462 = scmp.eq.s32.totalorder %s461, 0
      %s464 = sadd.s32 %s463, 1
      %s465 = scalar_select %p462, %s463, %s464
      %p468 = pneg %p462
      %p469 = scmp.eq.s32.totalorder %s30, 3
      %p470 = por %p468, %p469
      %p471 = scmp.ne.s32.totalorder %s463, %s466
      %p472 = scmp.eq.s32.totalorder %s30, 0
      %p473 = por %p471, %p472
      %p474 = scmp.ne.s32.totalorder %s463, %s466
      %p475 = scmp.eq.s32.totalorder %s35, 3
      %p476 = por %p474, %p475
      %p477 = scmp.ne.s32.totalorder %s466, %s467
      %p478 = scmp.eq.s32.totalorder %s35, 0
      %p479 = por %p477, %p478
      %p480 = scmp.ne.s32.totalorder %s466, %s467
      %p481 = scmp.eq.s32.totalorder %s36, 3
      %p482 = por %p480, %p481
      %p484 = scmp.ne.s32.totalorder %s467, %s483
      %p485 = scmp.eq.s32.totalorder %s36, 0
      %p486 = por %p484, %p485
      %s487 = ssub.s32 %s38, %s45
      %s488 = ssub.s32 %s37, %s49
      %s489 = sor.u32 %s487, %s488
      %p490 = scmp.eq.s32.totalorder %s489, 0
      %s492 = sadd.s32 %s491, 1
      %s493 = scalar_select %p490, %s491, %s492
      %p496 = pneg %p490
      %p497 = scmp.eq.s32.totalorder %s30, 3
      %p498 = por %p496, %p497
      %p499 = scmp.ne.s32.totalorder %s491, %s494
      %p500 = scmp.eq.s32.totalorder %s30, 0
      %p501 = por %p499, %p500
      %p502 = scmp.ne.s32.totalorder %s491, %s494
      %p503 = scmp.eq.s32.totalorder %s35, 3
      %p504 = por %p502, %p503
      %p505 = scmp.ne.s32.totalorder %s494, %s495
      %p506 = scmp.eq.s32.totalorder %s35, 0
      %p507 = por %p505, %p506
      %p508 = scmp.ne.s32.totalorder %s494, %s495
      %p509 = scmp.eq.s32.totalorder %s36, 3
      %p510 = por %p508, %p509
      %p512 = scmp.ne.s32.totalorder %s495, %s511
      %p513 = scmp.eq.s32.totalorder %s36, 0
      %p514 = por %p512, %p513
      %p515 = scmp.le.s32.totalorder 1, %s30
      %p516 = scmp.lt.s32.totalorder %s30, 5
      %p517 = pnand %p515, %p516
      %p518 = pneg %p517
      // Predicated region
      $region9: #{tpu_custom_call.1} parent=5 // pred_check
        _
      $region10: #{tpu_custom_call.1} parent=5 // pred_check_branch
        %520 = sbr.rel (%p517) target = $region12
      $region11: #{tpu_custom_call.1} parent=5 // pred_region
        %s521 = ssub.s32 %s30, 1
        // Predicated region
        $region13: #{tpu_custom_call.1} parent=11 // pred_check
          %p522 = pneg %p89
        $region14: #{tpu_custom_call.1} parent=11 // pred_check_branch
          %524 = sbr.rel (%p522) target = $region16
        $region15: #{tpu_custom_call.1} parent=11 // pred_region
          _
        $region16: #{tpu_custom_call.1} parent=11 // pred_fallthru
          _
      $region12: #{tpu_custom_call.1} parent=5 // pred_fallthru
        _
      %p525 = scmp.lt.s32.totalorder %s30, 4
      // Predicated region
      $region17: #{tpu_custom_call.1} parent=5 // pred_check
        %p526 = pneg %p525
      $region18: #{tpu_custom_call.1} parent=5 // pred_check_branch
        %528 = sbr.rel (%p526) target = $region20
      $region19: #{tpu_custom_call.1} parent=5 // pred_region
        // Predicated region
        $region21: #{tpu_custom_call.1} parent=19 // pred_check
          %p529 = pneg %p62
        $region22: #{tpu_custom_call.1} parent=19 // pred_check_branch
          %531 = sbr.rel (%p529) target = $region24
        $region23: #{tpu_custom_call.1} parent=19 // pred_region
          %p532 = scmp.lt.s32.totalorder %s37, 1
          %s533 = scalar_select %p532, %s37, 1
          %s534 = smul.addr %s533, 8
          %s535 = scalar_lea.vmem %s0, %s534
        $region24: #{tpu_custom_call.1} parent=19 // pred_fallthru
          _
        // Predicated region
        $region25: #{tpu_custom_call.1} parent=19 // pred_check
          %p536 = pneg %p109
        $region26: #{tpu_custom_call.1} parent=19 // pred_check_branch
          %538 = sbr.rel (%p536) target = $region28
        $region27: #{tpu_custom_call.1} parent=19 // pred_region
          %p539 = scmp.lt.s32.totalorder %s38, 1
          %s540 = scalar_select %p539, %s38, 1
          %s541 = smul.addr %s540, 8
          %s542 = smul.addr %s541, 4
          %s543 = scalar_lea.vmem %s2, %s542
        $region28: #{tpu_custom_call.1} parent=19 // pred_fallthru
          _
        // Predicated region
        $region29: #{tpu_custom_call.1} parent=19 // pred_check
          %p544 = pneg %p135
        $region30: #{tpu_custom_call.1} parent=19 // pred_check_branch
          %546 = sbr.rel (%p544) target = $region32
        $region31: #{tpu_custom_call.1} parent=19 // pred_region
          %p547 = scmp.lt.s32.totalorder %s38, 1
          %s548 = scalar_select %p547, %s38, 1
          %s549 = scalar_lea.vmem %s3, %s548
        $region32: #{tpu_custom_call.1} parent=19 // pred_fallthru
          _
        // Predicated region
        $region33: #{tpu_custom_call.1} parent=19 // pred_check
          %p550 = pneg %p161
        $region34: #{tpu_custom_call.1} parent=19 // pred_check_branch
          %552 = sbr.rel (%p550) target = $region36
        $region35: #{tpu_custom_call.1} parent=19 // pred_region
          %p553 = scmp.lt.s32.totalorder %s38, 1
          %s554 = scalar_select %p553, %s38, 1
          %s555 = smul.addr %s554, 8
          %s556 = smul.addr %s555, 4
          %s557 = scalar_lea.vmem %s4, %s556
        $region36: #{tpu_custom_call.1} parent=19 // pred_fallthru
          _
        // Predicated region
        $region37: #{tpu_custom_call.1} parent=19 // pred_check
          %p558 = pneg %p187
        $region38: #{tpu_custom_call.1} parent=19 // pred_check_branch
          %560 = sbr.rel (%p558) target = $region40
        $region39: #{tpu_custom_call.1} parent=19 // pred_region
          %p561 = scmp.lt.s32.totalorder %s38, 1
          %s562 = scalar_select %p561, %s38, 1
          %s563 = scalar_lea.vmem %s5, %s562
        $region40: #{tpu_custom_call.1} parent=19 // pred_fallthru
          _
        // Predicated region
        $region41: #{tpu_custom_call.1} parent=19 // pred_check
          %p564 = pneg %p213
        $region42: #{tpu_custom_call.1} parent=19 // pred_check_branch
          %566 = sbr.rel (%p564) target = $region44
        $region43: #{tpu_custom_call.1} parent=19 // pred_region
          %p567 = scmp.lt.s32.totalorder %s38, 1
          %s568 = scalar_select %p567, %s38, 1
          %s569 = smul.addr %s568, 8
          %s570 = smul.addr %s569, 4
          %s571 = scalar_lea.vmem %s6, %s570
        $region44: #{tpu_custom_call.1} parent=19 // pred_fallthru
          _
        // Predicated region
        $region45: #{tpu_custom_call.1} parent=19 // pred_check
          %p572 = pneg %p239
        $region46: #{tpu_custom_call.1} parent=19 // pred_check_branch
          %574 = sbr.rel (%p572) target = $region48
        $region47: #{tpu_custom_call.1} parent=19 // pred_region
          %p575 = scmp.lt.s32.totalorder %s38, 1
          %s576 = scalar_select %p575, %s38, 1
          %s577 = scalar_lea.vmem %s7, %s576
        $region48: #{tpu_custom_call.1} parent=19 // pred_fallthru
          _
        // Predicated region
        $region49: #{tpu_custom_call.1} parent=19 // pred_check
          %p578 = pneg %p265
        $region50: #{tpu_custom_call.1} parent=19 // pred_check_branch
          %580 = sbr.rel (%p578) target = $region52
        $region51: #{tpu_custom_call.1} parent=19 // pred_region
          %p581 = scmp.lt.s32.totalorder %s38, 1
          %s582 = scalar_select %p581, %s38, 1
          %s583 = scalar_lea.vmem %s8, %s582
        $region52: #{tpu_custom_call.1} parent=19 // pred_fallthru
          _
        // Predicated region
        $region53: #{tpu_custom_call.1} parent=19 // pred_check
          %p584 = pneg %p291
        $region54: #{tpu_custom_call.1} parent=19 // pred_check_branch
          %586 = sbr.rel (%p584) target = $region56
        $region55: #{tpu_custom_call.1} parent=19 // pred_region
          %p587 = scmp.lt.s32.totalorder %s38, 1
          %s588 = scalar_select %p587, %s38, 1
          %s589 = scalar_lea.vmem %s9, %s588
        $region56: #{tpu_custom_call.1} parent=19 // pred_fallthru
          _
        // Predicated region
        $region57: #{tpu_custom_call.1} parent=19 // pred_check
          %p590 = pneg %p317
        $region58: #{tpu_custom_call.1} parent=19 // pred_check_branch
          %592 = sbr.rel (%p590) target = $region60
        $region59: #{tpu_custom_call.1} parent=19 // pred_region
          %p593 = scmp.lt.s32.totalorder %s38, 1
          %s594 = scalar_select %p593, %s38, 1
          %s595 = smul.addr %s594, 16
          %s596 = smul.addr %s595, 4
          %s597 = scalar_lea.vmem %s10, %s596
        $region60: #{tpu_custom_call.1} parent=19 // pred_fallthru
          _
        // Predicated region
        $region61: #{tpu_custom_call.1} parent=19 // pred_check
          %p598 = pneg %p343
        $region62: #{tpu_custom_call.1} parent=19 // pred_check_branch
          %600 = sbr.rel (%p598) target = $region64
        $region63: #{tpu_custom_call.1} parent=19 // pred_region
          %p601 = scmp.lt.s32.totalorder %s38, 1
          %s602 = scalar_select %p601, %s38, 1
          %s603 = smul.addr %s602, 2
          %s604 = scalar_lea.vmem %s11, %s603
        $region64: #{tpu_custom_call.1} parent=19 // pred_fallthru
          _
        // Predicated region
        $region65: #{tpu_custom_call.1} parent=19 // pred_check
          %p605 = pneg %p369
        $region66: #{tpu_custom_call.1} parent=19 // pred_check_branch
          %607 = sbr.rel (%p605) target = $region68
        $region67: #{tpu_custom_call.1} parent=19 // pred_region
          %p608 = scmp.lt.s32.totalorder %s38, 1
          %s609 = scalar_select %p608, %s38, 1
          %s610 = smul.addr %s609, 32
          %s611 = smul.addr %s610, 4
          %s612 = scalar_lea.vmem %s12, %s611
        $region68: #{tpu_custom_call.1} parent=19 // pred_fallthru
          _
        // Predicated region
        $region69: #{tpu_custom_call.1} parent=19 // pred_check
          %p613 = pneg %p395
        $region70: #{tpu_custom_call.1} parent=19 // pred_check_branch
          %615 = sbr.rel (%p613) target = $region72
        $region71: #{tpu_custom_call.1} parent=19 // pred_region
          %p616 = scmp.lt.s32.totalorder %s38, 1
          %s617 = scalar_select %p616, %s38, 1
          %s618 = scalar_lea.vmem %s13, %s617
        $region72: #{tpu_custom_call.1} parent=19 // pred_fallthru
          _
        // Predicated region
        $region73: #{tpu_custom_call.1} parent=19 // pred_check
          %p619 = pneg %p421
        $region74: #{tpu_custom_call.1} parent=19 // pred_check_branch
          %621 = sbr.rel (%p619) target = $region76
        $region75: #{tpu_custom_call.1} parent=19 // pred_region
          %p622 = scmp.lt.s32.totalorder %s38, 1
          %s623 = scalar_select %p622, %s38, 1
          %s624 = scalar_lea.vmem %s14, %s623
        $region76: #{tpu_custom_call.1} parent=19 // pred_fallthru
          _
        // Predicated region
        $region77: #{tpu_custom_call.1} parent=19 // pred_check
          %p625 = pneg %p447
        $region78: #{tpu_custom_call.1} parent=19 // pred_check_branch
          %627 = sbr.rel (%p625) target = $region80
        $region79: #{tpu_custom_call.1} parent=19 // pred_region
          %p628 = scmp.lt.s32.totalorder %s38, 1
          %s629 = scalar_select %p628, %s38, 1
          %s630 = scalar_lea.vmem %s15, %s629
        $region80: #{tpu_custom_call.1} parent=19 // pred_fallthru
          _
      $region20: #{tpu_custom_call.1} parent=5 // pred_fallthru
        _
      %p631 = scmp.le.s32.totalorder 1, %s30
      %p632 = scmp.lt.s32.totalorder %s30, 5
      %p633 = pnand %p631, %p632
      %p634 = pneg %p633
      // Predicated region
      $region81: #{tpu_custom_call.1} parent=5 // pred_check
        _
      $region82: #{tpu_custom_call.1} parent=5 // pred_check_branch
        %636 = sbr.rel (%p633) target = $region84
      $region83: #{tpu_custom_call.1} parent=5 // pred_region
        %s637 = ssub.s32 %s30, 1
        %p638 = scmp.lt.s32.totalorder %s39, 1
        %s639 = scalar_select %p638, %s39, 1
        %s640 = smul.addr %s639, 8
        %s641 = scalar_lea.vmem %s0, %s640
        %p642 = pneg %p68
        %p643 = pneg %p65
        %p644 = pneg %p89
        %p645 = pneg %p86
        %p646 = scmp.lt.s32.totalorder %s40, 1
        %s647 = scalar_select %p646, %s40, 1
        %s648 = smul.addr %s647, 8
        %s649 = smul.addr %s648, 4
        %s650 = scalar_lea.vmem %s2, %s649
        %p651 = pneg %p115
        %p652 = pneg %p112
        %p653 = scmp.lt.s32.totalorder %s40, 1
        %s654 = scalar_select %p653, %s40, 1
        %s655 = scalar_lea.vmem %s3, %s654
        %p656 = pneg %p141
        %p657 = pneg %p138
        %p658 = scmp.lt.s32.totalorder %s40, 1
        %s659 = scalar_select %p658, %s40, 1
        %s660 = smul.addr %s659, 8
        %s661 = smul.addr %s660, 4
        %s662 = scalar_lea.vmem %s4, %s661
        %p663 = pneg %p167
        %p664 = pneg %p164
        %p665 = scmp.lt.s32.totalorder %s40, 1
        %s666 = scalar_select %p665, %s40, 1
        %s667 = scalar_lea.vmem %s5, %s666
        %p668 = pneg %p193
        %p669 = pneg %p190
        %p670 = scmp.lt.s32.totalorder %s40, 1
        %s671 = scalar_select %p670, %s40, 1
        %s672 = smul.addr %s671, 8
        %s673 = smul.addr %s672, 4
        %s674 = scalar_lea.vmem %s6, %s673
        %p675 = pneg %p219
        %p676 = pneg %p216
        %p677 = scmp.lt.s32.totalorder %s40, 1
        %s678 = scalar_select %p677, %s40, 1
        %s679 = scalar_lea.vmem %s7, %s678
        %p680 = pneg %p245
        %p681 = pneg %p242
        %p682 = scmp.lt.s32.totalorder %s40, 1
        %s683 = scalar_select %p682, %s40, 1
        %s684 = scalar_lea.vmem %s8, %s683
        %p685 = pneg %p271
        %p686 = pneg %p268
        %p687 = scmp.lt.s32.totalorder %s40, 1
        %s688 = scalar_select %p687, %s40, 1
        %s689 = scalar_lea.vmem %s9, %s688
        %p690 = pneg %p297
        %p691 = pneg %p294
        %p692 = scmp.lt.s32.totalorder %s40, 1
        %s693 = scalar_select %p692, %s40, 1
        %s694 = smul.addr %s693, 16
        %s695 = smul.addr %s694, 4
        %s696 = scalar_lea.vmem %s10, %s695
        %p697 = pneg %p323
        %p698 = pneg %p320
        %p699 = scmp.lt.s32.totalorder %s40, 1
        %s700 = scalar_select %p699, %s40, 1
        %s701 = smul.addr %s700, 2
        %s702 = scalar_lea.vmem %s11, %s701
        %p703 = pneg %p349
        %p704 = pneg %p346
        %p705 = scmp.lt.s32.totalorder %s40, 1
        %s706 = scalar_select %p705, %s40, 1
        %s707 = smul.addr %s706, 32
        %s708 = smul.addr %s707, 4
        %s709 = scalar_lea.vmem %s12, %s708
        %p710 = pneg %p375
        %p711 = pneg %p372
        %p712 = scmp.lt.s32.totalorder %s40, 1
        %s713 = scalar_select %p712, %s40, 1
        %s714 = scalar_lea.vmem %s13, %s713
        %p715 = pneg %p401
        %p716 = pneg %p398
        %p717 = scmp.lt.s32.totalorder %s40, 1
        %s718 = scalar_select %p717, %s40, 1
        %s719 = scalar_lea.vmem %s14, %s718
        %p720 = pneg %p427
        %p721 = pneg %p424
        %p722 = scmp.lt.s32.totalorder %s40, 1
        %s723 = scalar_select %p722, %s40, 1
        %s724 = scalar_lea.vmem %s15, %s723
        %p725 = pneg %p453
        %p726 = pneg %p450
        %p727 = pneg %p479
        %p728 = pneg %p476
        %s729 = sand.u32 %s466, 1
        %s730 = scalar_lea.sflag [#allocation3], %s729
        %s731 = sand.u32 %s466, 1
        %s732 = smul.addr %s731, 8
        %s733 = scalar_lea.vmem [#allocation2], %s732
        %p734 = pneg %p507
        %p735 = pneg %p504
        %s736 = sand.u32 %s494, 1
        %s737 = scalar_lea.sflag [#allocation5], %s736
        %s738 = sand.u32 %s494, 1
        %s739 = smul.addr %s738, 32
        %s740 = scalar_lea.vmem [#allocation4], %s739
        %p741 = scmp.lt.s32.totalorder %s39, 1
        %s742 = scalar_select %p741, %s39, 1
        %s743 = smul.addr %s742, 8
        %s744 = scalar_lea.vmem %s0, %s743
        %p745 = scmp.lt.s32.totalorder %s40, 1
        %s746 = scalar_select %p745, %s40, 1
        %s747 = smul.addr %s746, 8
        %s748 = smul.addr %s747, 4
        %s749 = scalar_lea.vmem %s2, %s748
        %p750 = scmp.lt.s32.totalorder %s40, 1
        %s751 = scalar_select %p750, %s40, 1
        %s752 = scalar_lea.vmem %s3, %s751
        %p753 = scmp.lt.s32.totalorder %s40, 1
        %s754 = scalar_select %p753, %s40, 1
        %s755 = smul.addr %s754, 8
        %s756 = smul.addr %s755, 4
        %s757 = scalar_lea.vmem %s4, %s756
        %p758 = scmp.lt.s32.totalorder %s40, 1
        %s759 = scalar_select %p758, %s40, 1
        %s760 = scalar_lea.vmem %s5, %s759
        %p761 = scmp.lt.s32.totalorder %s40, 1
        %s762 = scalar_select %p761, %s40, 1
        %s763 = smul.addr %s762, 8
        %s764 = smul.addr %s763, 4
        %s765 = scalar_lea.vmem %s6, %s764
        %p766 = scmp.lt.s32.totalorder %s40, 1
        %s767 = scalar_select %p766, %s40, 1
        %s768 = scalar_lea.vmem %s7, %s767
        %p769 = scmp.lt.s32.totalorder %s40, 1
        %s770 = scalar_select %p769, %s40, 1
        %s771 = scalar_lea.vmem %s8, %s770
        %p772 = scmp.lt.s32.totalorder %s40, 1
        %s773 = scalar_select %p772, %s40, 1
        %s774 = scalar_lea.vmem %s9, %s773
        %p775 = scmp.lt.s32.totalorder %s40, 1
        %s776 = scalar_select %p775, %s40, 1
        %s777 = smul.addr %s776, 16
        %s778 = smul.addr %s777, 4
        %s779 = scalar_lea.vmem %s10, %s778
        %p780 = scmp.lt.s32.totalorder %s40, 1
        %s781 = scalar_select %p780, %s40, 1
        %s782 = smul.addr %s781, 2
        %s783 = scalar_lea.vmem %s11, %s782
        %p784 = scmp.lt.s32.totalorder %s40, 1
        %s785 = scalar_select %p784, %s40, 1
        %s786 = smul.addr %s785, 32
        %s787 = smul.addr %s786, 4
        %s788 = scalar_lea.vmem %s12, %s787
        %p789 = scmp.lt.s32.totalorder %s40, 1
        %s790 = scalar_select %p789, %s40, 1
        %s791 = scalar_lea.vmem %s13, %s790
        %p792 = scmp.lt.s32.totalorder %s40, 1
        %s793 = scalar_select %p792, %s40, 1
        %s794 = scalar_lea.vmem %s14, %s793
        %p795 = scmp.lt.s32.totalorder %s40, 1
        %s796 = scalar_select %p795, %s40, 1
        %s797 = scalar_lea.vmem %s15, %s796
        %p799 = scmp.eq.s32.totalorder %s40, 0
        // Predicated region
        $region85: #{tpu_custom_call.1} parent=83 // pred_check
          %p800 = pneg %p799
        $region86: #{tpu_custom_call.1} parent=83 // pred_check_branch
          %802 = sbr.rel (%p800) target = $region88
        $region87: #{tpu_custom_call.1} parent=83 // pred_region
          %v803 = vld [vmem:[%s744] sm:$0xff]
          %vm804 = vcmask 523264
          %805 = vst.msk [vmem:[%s733] sm:$0xff] %vm804, %v803
        $region88: #{tpu_custom_call.1} parent=83 // pred_fallthru
          _
        %v806 = vld [vmem:[%s733] sm:$0xff]
        %v807 = vld [vmem:[%s1] sm:$0xff]
        %v808 = vld [vmem:[%s749] sm:$0xf]
        %v809 = vld [vmem:[%s749 + $0x4] sm:$0xf]
        %v810 = vld [vmem:[%s749 + $0x8] sm:$0xf]
        %v811 = vld [vmem:[%s749 + $0xc] sm:$0xf]
        %v812 = vld [vmem:[%s749 + $0x10] sm:$0xf]
        %v813 = vld [vmem:[%s749 + $0x14] sm:$0xf]
        %v814 = vld [vmem:[%s749 + $0x18] sm:$0xf]
        %v815 = vld [vmem:[%s749 + $0x1c] sm:$0xf]
        %v816 = vld [vmem:[%s752] sm:$0x1]
        %v817 = vld [vmem:[%s757] sm:$0xf]
        %v818 = vld [vmem:[%s757 + $0x4] sm:$0xf]
        %v819 = vld [vmem:[%s757 + $0x8] sm:$0xf]
        %v820 = vld [vmem:[%s757 + $0xc] sm:$0xf]
        %v821 = vld [vmem:[%s757 + $0x10] sm:$0xf]
        %v822 = vld [vmem:[%s757 + $0x14] sm:$0xf]
        %v823 = vld [vmem:[%s757 + $0x18] sm:$0xf]
        %v824 = vld [vmem:[%s757 + $0x1c] sm:$0xf]
        %v825 = vld [vmem:[%s760] sm:$0x1]
        %v826 = vld [vmem:[%s765] sm:$0xf]
        %v827 = vld [vmem:[%s765 + $0x4] sm:$0xf]
        %v828 = vld [vmem:[%s765 + $0x8] sm:$0xf]
        %v829 = vld [vmem:[%s765 + $0xc] sm:$0xf]
        %v830 = vld [vmem:[%s765 + $0x10] sm:$0xf]
        %v831 = vld [vmem:[%s765 + $0x14] sm:$0xf]
        %v832 = vld [vmem:[%s765 + $0x18] sm:$0xf]
        %v833 = vld [vmem:[%s765 + $0x1c] sm:$0xf]
        %v834 = vld [vmem:[%s768] sm:$0x1]
        %v835 = vpack.c.bf16 %v806, %v806
        %v837 = vlaneseq
        %v838 = vshrl.u32 %v837, 7
        %v839 = vsub.s32 0, %v838
        %v840 = vrot.slane %v816, %v839
        %v850 = vunpack.c.l.b16 %v808
        %v851 = vunpack.c.l.b16 %v809
        %v852 = vunpack.c.l.b16 %v810
        %v853 = vunpack.c.l.b16 %v811
        %v854 = vunpack.c.l.b16 %v812
        %v855 = vunpack.c.l.b16 %v813
        %v856 = vunpack.c.l.b16 %v814
        %v857 = vunpack.c.l.b16 %v815
        %v858 = vpack.c.b16 %v851, %v850
        %v859 = vpack.c.b16 %v853, %v852
        %v860 = vpack.c.b16 %v855, %v854
        %v861 = vpack.c.b16 %v857, %v856
        %vm866 = vcmask 523264
        %v868 = vsel %vm866, %v835, 0
        %870 = vmatprep.subr.bf16.mxu0 0
        %871 = vmatpush1.bf16.msra.mxu0 %v858
        %872 = vmatprep.subr.bf16.mxu0 0
        %873 = vmatpush1.bf16.msra.mxu0 %v859
        %874 = vmatprep.subr.bf16.mxu0 0
        %875 = vmatpush1.bf16.msra.mxu0 %v860
        %876 = vmatprep.subr.bf16.mxu0 0
        %877 = vmatpush1.bf16.msra.mxu0 %v861
        %878 = vmatprep.subr.bf16.mxu0 0
        %879 = vmatpush1.bf16.msra.mxu0 0
        %880 = vmatprep.subr.bf16.mxu0 0
        %881 = vmatpush1.bf16.msra.mxu0 0
        %882 = vmatprep.subr.bf16.mxu0 0
        %883 = vmatpush1.bf16.msra.mxu0 0
        %884 = vmatprep.subr.bf16.mxu0 0
        %885 = vmatpush1.bf16.msra.mxu0 0
        %886 = vmatprep.subr.bf16.mxu0 0
        %887 = vmatpush1.bf16.msra.mxu0 0
        %888 = vmatprep.subr.bf16.mxu0 0
        %889 = vmatpush1.bf16.msra.mxu0 0
        %890 = vmatprep.subr.bf16.mxu0 0
        %891 = vmatpush1.bf16.msra.mxu0 0
        %892 = vmatprep.subr.bf16.mxu0 0
        %893 = vmatpush1.bf16.msra.mxu0 0
        %894 = vmatprep.subr.bf16.mxu0 0
        %895 = vmatpush1.bf16.msra.mxu0 0
        %896 = vmatprep.subr.bf16.mxu0 0
        %897 = vmatpush1.bf16.msra.mxu0 0
        %898 = vmatprep.subr.bf16.mxu0 0
        %899 = vmatpush1.bf16.msra.mxu0 0
        %900 = vmatprep.subr.bf16.mxu0 0
        %901 = vmatpush1.bf16.msra.mxu0 0
        %902 = vmatprep.mubr.bf16.mxu0 0
        %903 = vmatmul.mubr.bf16.gmra.mrb[0].mxu0 %v868
        %v904 = vpop.f32.mrb[0].mxu0
        %v905 = vadd.f32 %v840, %v904
        %v906 = vpop.f32.mrb[0].mxu0
        %v907 = vpop.f32.mrb[0].mxu0
        %v908 = vpop.f32.mrb[0].mxu0
        %909 = vdwg.mxu0
        %v911 = vlaneseq
        %v912 = vshrl.u32 %v911, 7
        %v913 = vsub.s32 0, %v912
        %v914 = vrot.slane %v825, %v913
        %v924 = vunpack.c.l.b16 %v817
        %v925 = vunpack.c.l.b16 %v818
        %v926 = vunpack.c.l.b16 %v819
        %v927 = vunpack.c.l.b16 %v820
        %v928 = vunpack.c.l.b16 %v821
        %v929 = vunpack.c.l.b16 %v822
        %v930 = vunpack.c.l.b16 %v823
        %v931 = vunpack.c.l.b16 %v824
        %v932 = vpack.c.b16 %v925, %v924
        %v933 = vpack.c.b16 %v927, %v926
        %v934 = vpack.c.b16 %v929, %v928
        %v935 = vpack.c.b16 %v931, %v930
        %940 = vmatprep.subr.bf16.mxu0 0
        %941 = vmatpush1.bf16.msra.mxu0 %v932
        %942 = vmatprep.subr.bf16.mxu0 0
        %943 = vmatpush1.bf16.msra.mxu0 %v933
        %944 = vmatprep.subr.bf16.mxu0 0
        %945 = vmatpush1.bf16.msra.mxu0 %v934
        %946 = vmatprep.subr.bf16.mxu0 0
        %947 = vmatpush1.bf16.msra.mxu0 %v935
        %948 = vmatprep.subr.bf16.mxu0 0
        %949 = vmatpush1.bf16.msra.mxu0 0
        %950 = vmatprep.subr.bf16.mxu0 0
        %951 = vmatpush1.bf16.msra.mxu0 0
        %952 = vmatprep.subr.bf16.mxu0 0
        %953 = vmatpush1.bf16.msra.mxu0 0
        %954 = vmatprep.subr.bf16.mxu0 0
        %955 = vmatpush1.bf16.msra.mxu0 0
        %956 = vmatprep.subr.bf16.mxu0 0
        %957 = vmatpush1.bf16.msra.mxu0 0
        %958 = vmatprep.subr.bf16.mxu0 0
        %959 = vmatpush1.bf16.msra.mxu0 0
        %960 = vmatprep.subr.bf16.mxu0 0
        %961 = vmatpush1.bf16.msra.mxu0 0
        %962 = vmatprep.subr.bf16.mxu0 0
        %963 = vmatpush1.bf16.msra.mxu0 0
        %964 = vmatprep.subr.bf16.mxu0 0
        %965 = vmatpush1.bf16.msra.mxu0 0
        %966 = vmatprep.subr.bf16.mxu0 0
        %967 = vmatpush1.bf16.msra.mxu0 0
        %968 = vmatprep.subr.bf16.mxu0 0
        %969 = vmatpush1.bf16.msra.mxu0 0
        %970 = vmatprep.subr.bf16.mxu0 0
        %971 = vmatpush1.bf16.msra.mxu0 0
        %972 = vmatprep.mubr.bf16.mxu0 0
        %973 = vmatmul.mubr.bf16.gmra.mrb[0].mxu0 %v868
        %v974 = vpop.f32.mrb[0].mxu0
        %v975 = vadd.f32 %v914, %v974
        %v976 = vpop.f32.mrb[0].mxu0
        %v977 = vpop.f32.mrb[0].mxu0
        %v978 = vpop.f32.mrb[0].mxu0
        %979 = vdwg.mxu0
        %v980 = vpack.c.bf16 %v905, %v905
        %v981 = vpack.c.bf16 %v975, %v975
        %vm982 = vcmask 130048
        %v984 = vsel %vm982, %v980, 0
        %v987 = vsel %vm982, %v981, 0
        %989 = vmatprep.subr.bf16.mxu0 0
        %990 = vmatpush1.bf16.xpose.msra.mxu0 %v987
        %991 = vmatprep.subr.bf16.mxu0 0
        %992 = vmatpush1.bf16.xpose.msra.mxu0 0
        %993 = vmatprep.subr.bf16.mxu0 0
        %994 = vmatpush1.bf16.xpose.msra.mxu0 0
        %995 = vmatprep.subr.bf16.mxu0 0
        %996 = vmatpush1.bf16.xpose.msra.mxu0 0
        %997 = vmatprep.subr.bf16.mxu0 0
        %998 = vmatpush1.bf16.xpose.msra.mxu0 0
        %999 = vmatprep.subr.bf16.mxu0 0
        %1000 = vmatpush1.bf16.xpose.msra.mxu0 0
        %1001 = vmatprep.subr.bf16.mxu0 0
        %1002 = vmatpush1.bf16.xpose.msra.mxu0 0
        %1003 = vmatprep.subr.bf16.mxu0 0
        %1004 = vmatpush1.bf16.xpose.msra.mxu0 0
        %1005 = vmatprep.subr.bf16.mxu0 0
        %1006 = vmatpush1.bf16.xpose.msra.mxu0 0
        %1007 = vmatprep.subr.bf16.mxu0 0
        %1008 = vmatpush1.bf16.xpose.msra.mxu0 0
        %1009 = vmatprep.subr.bf16.mxu0 0
        %1010 = vmatpush1.bf16.xpose.msra.mxu0 0
        %1011 = vmatprep.subr.bf16.mxu0 0
        %1012 = vmatpush1.bf16.xpose.msra.mxu0 0
        %1013 = vmatprep.subr.bf16.mxu0 0
        %1014 = vmatpush1.bf16.xpose.msra.mxu0 0
        %1015 = vmatprep.subr.bf16.mxu0 0
        %1016 = vmatpush1.bf16.xpose.msra.mxu0 0
        %1017 = vmatprep.subr.bf16.mxu0 0
        %1018 = vmatpush1.bf16.xpose.msra.mxu0 0
        %1019 = vmatprep.subr.bf16.mxu0 0
        %1020 = vmatpush1.bf16.xpose.msra.mxu0 0
        %1021 = vmatprep.mubr.bf16.mxu0 0
        %1022 = vmatmul.mubr.bf16.gmra.mrb[0].mxu0 %v984
        %v1023 = vpop.f32.mrb[0].mxu0
        %v1024 = vadd.f32 %v807, %v1023
        %v1025 = vpop.f32.mrb[0].mxu0
        %v1026 = vpop.f32.mrb[0].mxu0
        %v1027 = vpop.f32.mrb[0].mxu0
        %1028 = vdwg.mxu0
        %vm1029 = vcmask 64512
        %v1030 = vsel %vm1029, %v1024, -inf
        %1031 = vmax.xlane.f32.xlu0 %v1030
        %v1032 = vpop.xlane.xlu0 %1031
        %v1033 = vsub.f32 %v1024, %v1032
        %v1034 = vmul.f32 %v1033, 1.442695
        %v1035 = vpow.pop %v1034
        %v1036 = vsel %vm1029, %v1035, 0.0
        %1037 = vadd.xlane.f32.xlu0 %v1036
        %v1038 = vpop.xlane.xlu0 %1037
        %v1039 = vrcp.pop %v1038
        %v1040 = vmul.f32 %v1035, %v1039
        %v1041 = vpack.c.bf16 %v1040, %v1040
        %1043 = vrot.lane.b32.xlu0 %v981, 64
        %v1044 = vpop.permute.xlu0 %1043
        %v1046 = vsel %vm1029, %v1041, 0
        %vm1048 = vcmask 1043456
        %v1050 = vsel %vm1048, %v1044, 0
        %1052 = vmatprep.subr.bf16.mxu0 0
        %1053 = vmatpush1.bf16.msra.mxu0 %v1050
        %1054 = vmatprep.subr.bf16.mxu0 0
        %1055 = vmatpush1.bf16.msra.mxu0 0
        %1056 = vmatprep.subr.bf16.mxu0 0
        %1057 = vmatpush1.bf16.msra.mxu0 0
        %1058 = vmatprep.subr.bf16.mxu0 0
        %1059 = vmatpush1.bf16.msra.mxu0 0
        %1060 = vmatprep.subr.bf16.mxu0 0
        %1061 = vmatpush1.bf16.msra.mxu0 0
        %1062 = vmatprep.subr.bf16.mxu0 0
        %1063 = vmatpush1.bf16.msra.mxu0 0
        %1064 = vmatprep.subr.bf16.mxu0 0
        %1065 = vmatpush1.bf16.msra.mxu0 0
        %1066 = vmatprep.subr.bf16.mxu0 0
        %1067 = vmatpush1.bf16.msra.mxu0 0
        %1068 = vmatprep.subr.bf16.mxu0 0
        %1069 = vmatpush1.bf16.msra.mxu0 0
        %1070 = vmatprep.subr.bf16.mxu0 0
        %1071 = vmatpush1.bf16.msra.mxu0 0
        %1072 = vmatprep.subr.bf16.mxu0 0
        %1073 = vmatpush1.bf16.msra.mxu0 0
        %1074 = vmatprep.subr.bf16.mxu0 0
        %1075 = vmatpush1.bf16.msra.mxu0 0
        %1076 = vmatprep.subr.bf16.mxu0 0
        %1077 = vmatpush1.bf16.msra.mxu0 0
        %1078 = vmatprep.subr.bf16.mxu0 0
        %1079 = vmatpush1.bf16.msra.mxu0 0
        %1080 = vmatprep.subr.bf16.mxu0 0
        %1081 = vmatpush1.bf16.msra.mxu0 0
        %1082 = vmatprep.subr.bf16.mxu0 0
        %1083 = vmatpush1.bf16.msra.mxu0 0
        %1084 = vmatprep.mubr.bf16.mxu0 0
        %1085 = vmatmul.mubr.bf16.gmra.mrb[0].mxu0 %v1046
        %v1086 = vpop.f32.mrb[0].mxu0
        %v1087 = vadd.f32 0.0, %v1086
        %v1088 = vpop.f32.mrb[0].mxu0
        %v1089 = vpop.f32.mrb[0].mxu0
        %v1090 = vpop.f32.mrb[0].mxu0
        %1091 = vdwg.mxu0
        %1093 = vrot.lane.b32.xlu0 %v980, 112
        %v1094 = vpop.permute.xlu0 %1093
        %1095 = vrot.lane.b32.xlu0 %v981, 112
        %v1096 = vpop.permute.xlu0 %1095
        %v1098 = vsel %vm982, %v1094, 0
        %v1101 = vsel %vm982, %v1096, 0
        %1103 = vmatprep.subr.bf16.mxu0 0
        %1104 = vmatpush1.bf16.xpose.msra.mxu0 %v1101
        %1105 = vmatprep.subr.bf16.mxu0 0
        %1106 = vmatpush1.bf16.xpose.msra.mxu0 0
        %1107 = vmatprep.subr.bf16.mxu0 0
        %1108 = vmatpush1.bf16.xpose.msra.mxu0 0
        %1109 = vmatprep.subr.bf16.mxu0 0
        %1110 = vmatpush1.bf16.xpose.msra.mxu0 0
        %1111 = vmatprep.subr.bf16.mxu0 0
        %1112 = vmatpush1.bf16.xpose.msra.mxu0 0
        %1113 = vmatprep.subr.bf16.mxu0 0
        %1114 = vmatpush1.bf16.xpose.msra.mxu0 0
        %1115 = vmatprep.subr.bf16.mxu0 0
        %1116 = vmatpush1.bf16.xpose.msra.mxu0 0
        %1117 = vmatprep.subr.bf16.mxu0 0
        %1118 = vmatpush1.bf16.xpose.msra.mxu0 0
        %1119 = vmatprep.subr.bf16.mxu0 0
        %1120 = vmatpush1.bf16.xpose.msra.mxu0 0
        %1121 = vmatprep.subr.bf16.mxu0 0
        %1122 = vmatpush1.bf16.xpose.msra.mxu0 0
        %1123 = vmatprep.subr.bf16.mxu0 0
        %1124 = vmatpush1.bf16.xpose.msra.mxu0 0
        %1125 = vmatprep.subr.bf16.mxu0 0
        %1126 = vmatpush1.bf16.xpose.msra.mxu0 0
        %1127 = vmatprep.subr.bf16.mxu0 0
        %1128 = vmatpush1.bf16.xpose.msra.mxu0 0
        %1129 = vmatprep.subr.bf16.mxu0 0
        %1130 = vmatpush1.bf16.xpose.msra.mxu0 0
        %1131 = vmatprep.subr.bf16.mxu0 0
        %1132 = vmatpush1.bf16.xpose.msra.mxu0 0
        %1133 = vmatprep.subr.bf16.mxu0 0
        %1134 = vmatpush1.bf16.xpose.msra.mxu0 0
        %1135 = vmatprep.mubr.bf16.mxu0 0
        %1136 = vmatmul.mubr.bf16.gmra.mrb[0].mxu0 %v1098
        %v1137 = vpop.f32.mrb[0].mxu0
        %v1138 = vadd.f32 %v807, %v1137
        %v1139 = vpop.f32.mrb[0].mxu0
        %v1140 = vpop.f32.mrb[0].mxu0
        %v1141 = vpop.f32.mrb[0].mxu0
        %1142 = vdwg.mxu0
        %v1143 = vsel %vm1029, %v1138, -inf
        %1144 = vmax.xlane.f32.xlu0 %v1143
        %v1145 = vpop.xlane.xlu0 %1144
        %v1146 = vsub.f32 %v1138, %v1145
        %v1147 = vmul.f32 %v1146, 1.442695
        %v1148 = vpow.pop %v1147
        %v1149 = vsel %vm1029, %v1148, 0.0
        %1150 = vadd.xlane.f32.xlu0 %v1149
        %v1151 = vpop.xlane.xlu0 %1150
        %v1152 = vrcp.pop %v1151
        %v1153 = vmul.f32 %v1148, %v1152
        %v1154 = vpack.c.bf16 %v1153, %v1153
        %1155 = vrot.lane.b32.xlu0 %v981, 48
        %v1156 = vpop.permute.xlu0 %1155
        %v1158 = vsel %vm1029, %v1154, 0
        %v1161 = vsel %vm1048, %v1156, 0
        %1163 = vmatprep.subr.bf16.mxu0 0
        %1164 = vmatpush1.bf16.msra.mxu0 %v1161
        %1165 = vmatprep.subr.bf16.mxu0 0
        %1166 = vmatpush1.bf16.msra.mxu0 0
        %1167 = vmatprep.subr.bf16.mxu0 0
        %1168 = vmatpush1.bf16.msra.mxu0 0
        %1169 = vmatprep.subr.bf16.mxu0 0
        %1170 = vmatpush1.bf16.msra.mxu0 0
        %1171 = vmatprep.subr.bf16.mxu0 0
        %1172 = vmatpush1.bf16.msra.mxu0 0
        %1173 = vmatprep.subr.bf16.mxu0 0
        %1174 = vmatpush1.bf16.msra.mxu0 0
        %1175 = vmatprep.subr.bf16.mxu0 0
        %1176 = vmatpush1.bf16.msra.mxu0 0
        %1177 = vmatprep.subr.bf16.mxu0 0
        %1178 = vmatpush1.bf16.msra.mxu0 0
        %1179 = vmatprep.subr.bf16.mxu0 0
        %1180 = vmatpush1.bf16.msra.mxu0 0
        %1181 = vmatprep.subr.bf16.mxu0 0
        %1182 = vmatpush1.bf16.msra.mxu0 0
        %1183 = vmatprep.subr.bf16.mxu0 0
        %1184 = vmatpush1.bf16.msra.mxu0 0
        %1185 = vmatprep.subr.bf16.mxu0 0
        %1186 = vmatpush1.bf16.msra.mxu0 0
        %1187 = vmatprep.subr.bf16.mxu0 0
        %1188 = vmatpush1.bf16.msra.mxu0 0
        %1189 = vmatprep.subr.bf16.mxu0 0
        %1190 = vmatpush1.bf16.msra.mxu0 0
        %1191 = vmatprep.subr.bf16.mxu0 0
        %1192 = vmatpush1.bf16.msra.mxu0 0
        %1193 = vmatprep.subr.bf16.mxu0 0
        %1194 = vmatpush1.bf16.msra.mxu0 0
        %1195 = vmatprep.mubr.bf16.mxu0 0
        %1196 = vmatmul.mubr.bf16.gmra.mrb[0].mxu0 %v1158
        %v1197 = vpop.f32.mrb[0].mxu0
        %v1198 = vadd.f32 0.0, %v1197
        %v1199 = vpop.f32.mrb[0].mxu0
        %v1200 = vpop.f32.mrb[0].mxu0
        %v1201 = vpop.f32.mrb[0].mxu0
        %1202 = vdwg.mxu0
        %1203 = vrot.lane.b32.xlu0 %v980, 96
        %v1204 = vpop.permute.xlu0 %1203
        %1205 = vrot.lane.b32.xlu0 %v981, 96
        %v1206 = vpop.permute.xlu0 %1205
        %v1208 = vsel %vm982, %v1204, 0
        %v1211 = vsel %vm982, %v1206, 0
        %1213 = vmatprep.subr.bf16.mxu0 0
        %1214 = vmatpush1.bf16.xpose.msra.mxu0 %v1211
        %1215 = vmatprep.subr.bf16.mxu0 0
        %1216 = vmatpush1.bf16.xpose.msra.mxu0 0
        %1217 = vmatprep.subr.bf16.mxu0 0
        %1218 = vmatpush1.bf16.xpose.msra.mxu0 0
        %1219 = vmatprep.subr.bf16.mxu0 0
        %1220 = vmatpush1.bf16.xpose.msra.mxu0 0
        %1221 = vmatprep.subr.bf16.mxu0 0
        %1222 = vmatpush1.bf16.xpose.msra.mxu0 0
        %1223 = vmatprep.subr.bf16.mxu0 0
        %1224 = vmatpush1.bf16.xpose.msra.mxu0 0
        %1225 = vmatprep.subr.bf16.mxu0 0
        %1226 = vmatpush1.bf16.xpose.msra.mxu0 0
        %1227 = vmatprep.subr.bf16.mxu0 0
        %1228 = vmatpush1.bf16.xpose.msra.mxu0 0
        %1229 = vmatprep.subr.bf16.mxu0 0
        %1230 = vmatpush1.bf16.xpose.msra.mxu0 0
        %1231 = vmatprep.subr.bf16.mxu0 0
        %1232 = vmatpush1.bf16.xpose.msra.mxu0 0
        %1233 = vmatprep.subr.bf16.mxu0 0
        %1234 = vmatpush1.bf16.xpose.msra.mxu0 0
        %1235 = vmatprep.subr.bf16.mxu0 0
        %1236 = vmatpush1.bf16.xpose.msra.mxu0 0
        %1237 = vmatprep.subr.bf16.mxu0 0
        %1238 = vmatpush1.bf16.xpose.msra.mxu0 0
        %1239 = vmatprep.subr.bf16.mxu0 0
        %1240 = vmatpush1.bf16.xpose.msra.mxu0 0
        %1241 = vmatprep.subr.bf16.mxu0 0
        %1242 = vmatpush1.bf16.xpose.msra.mxu0 0
        %1243 = vmatprep.subr.bf16.mxu0 0
        %1244 = vmatpush1.bf16.xpose.msra.mxu0 0
        %1245 = vmatprep.mubr.bf16.mxu0 0
        %1246 = vmatmul.mubr.bf16.gmra.mrb[0].mxu0 %v1208
        %v1247 = vpop.f32.mrb[0].mxu0
        %v1248 = vadd.f32 %v807, %v1247
        %v1249 = vpop.f32.mrb[0].mxu0
        %v1250 = vpop.f32.mrb[0].mxu0
        %v1251 = vpop.f32.mrb[0].mxu0
        %1252 = vdwg.mxu0
        %v1253 = vsel %vm1029, %v1248, -inf
        %1254 = vmax.xlane.f32.xlu0 %v1253
        %v1255 = vpop.xlane.xlu0 %1254
        %v1256 = vsub.f32 %v1248, %v1255
        %v1257 = vmul.f32 %v1256, 1.442695
        %v1258 = vpow.pop %v1257
        %v1259 = vsel %vm1029, %v1258, 0.0
        %1260 = vadd.xlane.f32.xlu0 %v1259
        %v1261 = vpop.xlane.xlu0 %1260
        %v1262 = vrcp.pop %v1261
        %v1263 = vmul.f32 %v1258, %v1262
        %v1264 = vpack.c.bf16 %v1263, %v1263
        %1265 = vrot.lane.b32.xlu0 %v981, 32
        %v1266 = vpop.permute.xlu0 %1265
        %v1268 = vsel %vm1029, %v1264, 0
        %v1271 = vsel %vm1048, %v1266, 0
        %1273 = vmatprep.subr.bf16.mxu0 0
        %1274 = vmatpush1.bf16.msra.mxu0 %v1271
        %1275 = vmatprep.subr.bf16.mxu0 0
        %1276 = vmatpush1.bf16.msra.mxu0 0
        %1277 = vmatprep.subr.bf16.mxu0 0
        %1278 = vmatpush1.bf16.msra.mxu0 0
        %1279 = vmatprep.subr.bf16.mxu0 0
        %1280 = vmatpush1.bf16.msra.mxu0 0
        %1281 = vmatprep.subr.bf16.mxu0 0
        %1282 = vmatpush1.bf16.msra.mxu0 0
        %1283 = vmatprep.subr.bf16.mxu0 0
        %1284 = vmatpush1.bf16.msra.mxu0 0
        %1285 = vmatprep.subr.bf16.mxu0 0
        %1286 = vmatpush1.bf16.msra.mxu0 0
        %1287 = vmatprep.subr.bf16.mxu0 0
        %1288 = vmatpush1.bf16.msra.mxu0 0
        %1289 = vmatprep.subr.bf16.mxu0 0
        %1290 = vmatpush1.bf16.msra.mxu0 0
        %1291 = vmatprep.subr.bf16.mxu0 0
        %1292 = vmatpush1.bf16.msra.mxu0 0
        %1293 = vmatprep.subr.bf16.mxu0 0
        %1294 = vmatpush1.bf16.msra.mxu0 0
        %1295 = vmatprep.subr.bf16.mxu0 0
        %1296 = vmatpush1.bf16.msra.mxu0 0
        %1297 = vmatprep.subr.bf16.mxu0 0
        %1298 = vmatpush1.bf16.msra.mxu0 0
        %1299 = vmatprep.subr.bf16.mxu0 0
        %1300 = vmatpush1.bf16.msra.mxu0 0
        %1301 = vmatprep.subr.bf16.mxu0 0
        %1302 = vmatpush1.bf16.msra.mxu0 0
        %1303 = vmatprep.subr.bf16.mxu0 0
        %1304 = vmatpush1.bf16.msra.mxu0 0
        %1305 = vmatprep.mubr.bf16.mxu0 0
        %1306 = vmatmul.mubr.bf16.gmra.mrb[0].mxu0 %v1268
        %v1307 = vpop.f32.mrb[0].mxu0
        %v1308 = vadd.f32 0.0, %v1307
        %v1309 = vpop.f32.mrb[0].mxu0
        %v1310 = vpop.f32.mrb[0].mxu0
        %v1311 = vpop.f32.mrb[0].mxu0
        %1312 = vdwg.mxu0
        %1313 = vrot.lane.b32.xlu0 %v980, 80
        %v1314 = vpop.permute.xlu0 %1313
        %1315 = vrot.lane.b32.xlu0 %v981, 80
        %v1316 = vpop.permute.xlu0 %1315
        %v1318 = vsel %vm982, %v1314, 0
        %v1321 = vsel %vm982, %v1316, 0
        %1323 = vmatprep.subr.bf16.mxu0 0
        %1324 = vmatpush1.bf16.xpose.msra.mxu0 %v1321
        %1325 = vmatprep.subr.bf16.mxu0 0
        %1326 = vmatpush1.bf16.xpose.msra.mxu0 0
        %1327 = vmatprep.subr.bf16.mxu0 0
        %1328 = vmatpush1.bf16.xpose.msra.mxu0 0
        %1329 = vmatprep.subr.bf16.mxu0 0
        %1330 = vmatpush1.bf16.xpose.msra.mxu0 0
        %1331 = vmatprep.subr.bf16.mxu0 0
        %1332 = vmatpush1.bf16.xpose.msra.mxu0 0
        %1333 = vmatprep.subr.bf16.mxu0 0
        %1334 = vmatpush1.bf16.xpose.msra.mxu0 0
        %1335 = vmatprep.subr.bf16.mxu0 0
        %1336 = vmatpush1.bf16.xpose.msra.mxu0 0
        %1337 = vmatprep.subr.bf16.mxu0 0
        %1338 = vmatpush1.bf16.xpose.msra.mxu0 0
        %1339 = vmatprep.subr.bf16.mxu0 0
        %1340 = vmatpush1.bf16.xpose.msra.mxu0 0
        %1341 = vmatprep.subr.bf16.mxu0 0
        %1342 = vmatpush1.bf16.xpose.msra.mxu0 0
        %1343 = vmatprep.subr.bf16.mxu0 0
        %1344 = vmatpush1.bf16.xpose.msra.mxu0 0
        %1345 = vmatprep.subr.bf16.mxu0 0
        %1346 = vmatpush1.bf16.xpose.msra.mxu0 0
        %1347 = vmatprep.subr.bf16.mxu0 0
        %1348 = vmatpush1.bf16.xpose.msra.mxu0 0
        %1349 = vmatprep.subr.bf16.mxu0 0
        %1350 = vmatpush1.bf16.xpose.msra.mxu0 0
        %1351 = vmatprep.subr.bf16.mxu0 0
        %1352 = vmatpush1.bf16.xpose.msra.mxu0 0
        %1353 = vmatprep.subr.bf16.mxu0 0
        %1354 = vmatpush1.bf16.xpose.msra.mxu0 0
        %1355 = vmatprep.mubr.bf16.mxu0 0
        %1356 = vmatmul.mubr.bf16.gmra.mrb[0].mxu0 %v1318
        %v1357 = vpop.f32.mrb[0].mxu0
        %v1358 = vadd.f32 %v807, %v1357
        %v1359 = vpop.f32.mrb[0].mxu0
        %v1360 = vpop.f32.mrb[0].mxu0
        %v1361 = vpop.f32.mrb[0].mxu0
        %1362 = vdwg.mxu0
        %v1363 = vsel %vm1029, %v1358, -inf
        %1364 = vmax.xlane.f32.xlu0 %v1363
        %v1365 = vpop.xlane.xlu0 %1364
        %v1366 = vsub.f32 %v1358, %v1365
        %v1367 = vmul.f32 %v1366, 1.442695
        %v1368 = vpow.pop %v1367
        %v1369 = vsel %vm1029, %v1368, 0.0
        %1370 = vadd.xlane.f32.xlu0 %v1369
        %v1371 = vpop.xlane.xlu0 %1370
        %v1372 = vrcp.pop %v1371
        %v1373 = vmul.f32 %v1368, %v1372
        %v1374 = vpack.c.bf16 %v1373, %v1373
        %1375 = vrot.lane.b32.xlu0 %v981, 16
        %v1376 = vpop.permute.xlu0 %1375
        %v1378 = vsel %vm1029, %v1374, 0
        %v1381 = vsel %vm1048, %v1376, 0
        %1383 = vmatprep.subr.bf16.mxu0 0
        %1384 = vmatpush1.bf16.msra.mxu0 %v1381
        %1385 = vmatprep.subr.bf16.mxu0 0
        %1386 = vmatpush1.bf16.msra.mxu0 0
        %1387 = vmatprep.subr.bf16.mxu0 0
        %1388 = vmatpush1.bf16.msra.mxu0 0
        %1389 = vmatprep.subr.bf16.mxu0 0
        %1390 = vmatpush1.bf16.msra.mxu0 0
        %1391 = vmatprep.subr.bf16.mxu0 0
        %1392 = vmatpush1.bf16.msra.mxu0 0
        %1393 = vmatprep.subr.bf16.mxu0 0
        %1394 = vmatpush1.bf16.msra.mxu0 0
        %1395 = vmatprep.subr.bf16.mxu0 0
        %1396 = vmatpush1.bf16.msra.mxu0 0
        %1397 = vmatprep.subr.bf16.mxu0 0
        %1398 = vmatpush1.bf16.msra.mxu0 0
        %1399 = vmatprep.subr.bf16.mxu0 0
        %1400 = vmatpush1.bf16.msra.mxu0 0
        %1401 = vmatprep.subr.bf16.mxu0 0
        %1402 = vmatpush1.bf16.msra.mxu0 0
        %1403 = vmatprep.subr.bf16.mxu0 0
        %1404 = vmatpush1.bf16.msra.mxu0 0
        %1405 = vmatprep.subr.bf16.mxu0 0
        %1406 = vmatpush1.bf16.msra.mxu0 0
        %1407 = vmatprep.subr.bf16.mxu0 0
        %1408 = vmatpush1.bf16.msra.mxu0 0
        %1409 = vmatprep.subr.bf16.mxu0 0
        %1410 = vmatpush1.bf16.msra.mxu0 0
        %1411 = vmatprep.subr.bf16.mxu0 0
        %1412 = vmatpush1.bf16.msra.mxu0 0
        %1413 = vmatprep.subr.bf16.mxu0 0
        %1414 = vmatpush1.bf16.msra.mxu0 0
        %1415 = vmatprep.mubr.bf16.mxu0 0
        %1416 = vmatmul.mubr.bf16.gmra.mrb[0].mxu0 %v1378
        %v1417 = vpop.f32.mrb[0].mxu0
        %v1418 = vadd.f32 0.0, %v1417
        %v1419 = vpop.f32.mrb[0].mxu0
        %v1420 = vpop.f32.mrb[0].mxu0
        %v1421 = vpop.f32.mrb[0].mxu0
        %1422 = vdwg.mxu0
        %v1423 = vpack.c.bf16 %v1087, %v1087
        %v1424 = vpack.c.bf16 %v1198, %v1198
        %v1427 = vunpack.c.l.b16 %v828
        %v1428 = vunpack.c.l.b16 %v829
        %v1429 = vpack.c.b16 %v1428, %v1427
        %v1432 = vsel %vm982, %v1424, 0
        %1434 = vmatprep.subr.bf16.mxu0 0
        %1435 = vmatpush1.bf16.msra.mxu0 %v1429
        %1436 = vmatprep.subr.bf16.mxu0 0
        %1437 = vmatpush1.bf16.msra.mxu0 0
        %1438 = vmatprep.subr.bf16.mxu0 0
        %1439 = vmatpush1.bf16.msra.mxu0 0
        %1440 = vmatprep.subr.bf16.mxu0 0
        %1441 = vmatpush1.bf16.msra.mxu0 0
        %1442 = vmatprep.subr.bf16.mxu0 0
        %1443 = vmatpush1.bf16.msra.mxu0 0
        %1444 = vmatprep.subr.bf16.mxu0 0
        %1445 = vmatpush1.bf16.msra.mxu0 0
        %1446 = vmatprep.subr.bf16.mxu0 0
        %1447 = vmatpush1.bf16.msra.mxu0 0
        %1448 = vmatprep.subr.bf16.mxu0 0
        %1449 = vmatpush1.bf16.msra.mxu0 0
        %1450 = vmatprep.subr.bf16.mxu0 0
        %1451 = vmatpush1.bf16.msra.mxu0 0
        %1452 = vmatprep.subr.bf16.mxu0 0
        %1453 = vmatpush1.bf16.msra.mxu0 0
        %1454 = vmatprep.subr.bf16.mxu0 0
        %1455 = vmatpush1.bf16.msra.mxu0 0
        %1456 = vmatprep.subr.bf16.mxu0 0
        %1457 = vmatpush1.bf16.msra.mxu0 0
        %1458 = vmatprep.subr.bf16.mxu0 0
        %1459 = vmatpush1.bf16.msra.mxu0 0
        %1460 = vmatprep.subr.bf16.mxu0 0
        %1461 = vmatpush1.bf16.msra.mxu0 0
        %1462 = vmatprep.subr.bf16.mxu0 0
        %1463 = vmatpush1.bf16.msra.mxu0 0
        %1464 = vmatprep.subr.bf16.mxu0 0
        %1465 = vmatpush1.bf16.msra.mxu0 0
        %1466 = vmatprep.mubr.bf16.mxu0 0
        %1467 = vmatmul.mubr.bf16.gmra.mrb[0].mxu0 %v1432
        %v1468 = vpop.f32.mrb[0].mxu0
        %v1469 = vadd.f32 0.0, %v1468
        %v1470 = vpop.f32.mrb[0].mxu0
        %v1471 = vpop.f32.mrb[0].mxu0
        %v1472 = vpop.f32.mrb[0].mxu0
        %1473 = vdwg.mxu0
        %v1476 = vunpack.c.l.b16 %v826
        %v1477 = vunpack.c.l.b16 %v827
        %v1478 = vpack.c.b16 %v1477, %v1476
        %v1481 = vsel %vm982, %v1423, 0
        %1483 = vmatprep.subr.bf16.mxu0 0
        %1484 = vmatpush1.bf16.msra.mxu0 %v1478
        %1485 = vmatprep.subr.bf16.mxu0 0
        %1486 = vmatpush1.bf16.msra.mxu0 0
        %1487 = vmatprep.subr.bf16.mxu0 0
        %1488 = vmatpush1.bf16.msra.mxu0 0
        %1489 = vmatprep.subr.bf16.mxu0 0
        %1490 = vmatpush1.bf16.msra.mxu0 0
        %1491 = vmatprep.subr.bf16.mxu0 0
        %1492 = vmatpush1.bf16.msra.mxu0 0
        %1493 = vmatprep.subr.bf16.mxu0 0
        %1494 = vmatpush1.bf16.msra.mxu0 0
        %1495 = vmatprep.subr.bf16.mxu0 0
        %1496 = vmatpush1.bf16.msra.mxu0 0
        %1497 = vmatprep.subr.bf16.mxu0 0
        %1498 = vmatpush1.bf16.msra.mxu0 0
        %1499 = vmatprep.subr.bf16.mxu0 0
        %1500 = vmatpush1.bf16.msra.mxu0 0
        %1501 = vmatprep.subr.bf16.mxu0 0
        %1502 = vmatpush1.bf16.msra.mxu0 0
        %1503 = vmatprep.subr.bf16.mxu0 0
        %1504 = vmatpush1.bf16.msra.mxu0 0
        %1505 = vmatprep.subr.bf16.mxu0 0
        %1506 = vmatpush1.bf16.msra.mxu0 0
        %1507 = vmatprep.subr.bf16.mxu0 0
        %1508 = vmatpush1.bf16.msra.mxu0 0
        %1509 = vmatprep.subr.bf16.mxu0 0
        %1510 = vmatpush1.bf16.msra.mxu0 0
        %1511 = vmatprep.subr.bf16.mxu0 0
        %1512 = vmatpush1.bf16.msra.mxu0 0
        %1513 = vmatprep.subr.bf16.mxu0 0
        %1514 = vmatpush1.bf16.msra.mxu0 0
        %1515 = vmatprep.mubr.bf16.mxu0 0
        %1516 = vmatmul.mubr.bf16.gmra.mrb[0].mxu0 %v1481
        %v1517 = vpop.f32.mrb[0].mxu0
        %v1518 = vadd.f32 %v1469, %v1517
        %v1519 = vpop.f32.mrb[0].mxu0
        %v1520 = vpop.f32.mrb[0].mxu0
        %v1521 = vpop.f32.mrb[0].mxu0
        %1522 = vdwg.mxu0
        %v1523 = vpack.c.bf16 %v1308, %v1308
        %v1526 = vunpack.c.l.b16 %v830
        %v1527 = vunpack.c.l.b16 %v831
        %v1528 = vpack.c.b16 %v1527, %v1526
        %v1531 = vsel %vm982, %v1523, 0
        %1533 = vmatprep.subr.bf16.mxu0 0
        %1534 = vmatpush1.bf16.msra.mxu0 %v1528
        %1535 = vmatprep.subr.bf16.mxu0 0
        %1536 = vmatpush1.bf16.msra.mxu0 0
        %1537 = vmatprep.subr.bf16.mxu0 0
        %1538 = vmatpush1.bf16.msra.mxu0 0
        %1539 = vmatprep.subr.bf16.mxu0 0
        %1540 = vmatpush1.bf16.msra.mxu0 0
        %1541 = vmatprep.subr.bf16.mxu0 0
        %1542 = vmatpush1.bf16.msra.mxu0 0
        %1543 = vmatprep.subr.bf16.mxu0 0
        %1544 = vmatpush1.bf16.msra.mxu0 0
        %1545 = vmatprep.subr.bf16.mxu0 0
        %1546 = vmatpush1.bf16.msra.mxu0 0
        %1547 = vmatprep.subr.bf16.mxu0 0
        %1548 = vmatpush1.bf16.msra.mxu0 0
        %1549 = vmatprep.subr.bf16.mxu0 0
        %1550 = vmatpush1.bf16.msra.mxu0 0
        %1551 = vmatprep.subr.bf16.mxu0 0
        %1552 = vmatpush1.bf16.msra.mxu0 0
        %1553 = vmatprep.subr.bf16.mxu0 0
        %1554 = vmatpush1.bf16.msra.mxu0 0
        %1555 = vmatprep.subr.bf16.mxu0 0
        %1556 = vmatpush1.bf16.msra.mxu0 0
        %1557 = vmatprep.subr.bf16.mxu0 0
        %1558 = vmatpush1.bf16.msra.mxu0 0
        %1559 = vmatprep.subr.bf16.mxu0 0
        %1560 = vmatpush1.bf16.msra.mxu0 0
        %1561 = vmatprep.subr.bf16.mxu0 0
        %1562 = vmatpush1.bf16.msra.mxu0 0
        %1563 = vmatprep.subr.bf16.mxu0 0
        %1564 = vmatpush1.bf16.msra.mxu0 0
        %1565 = vmatprep.mubr.bf16.mxu0 0
        %1566 = vmatmul.mubr.bf16.gmra.mrb[0].mxu0 %v1531
        %v1567 = vpop.f32.mrb[0].mxu0
        %v1568 = vadd.f32 0.0, %v1567
        %v1569 = vpop.f32.mrb[0].mxu0
        %v1570 = vpop.f32.mrb[0].mxu0
        %v1571 = vpop.f32.mrb[0].mxu0
        %1572 = vdwg.mxu0
        %v1573 = vadd.f32 %v1518, %v1568
        %v1574 = vpack.c.bf16 %v1418, %v1418
        %v1577 = vunpack.c.l.b16 %v832
        %v1578 = vunpack.c.l.b16 %v833
        %v1579 = vpack.c.b16 %v1578, %v1577
        %v1582 = vsel %vm982, %v1574, 0
        %1584 = vmatprep.subr.bf16.mxu0 0
        %1585 = vmatpush1.bf16.msra.mxu0 %v1579
        %1586 = vmatprep.subr.bf16.mxu0 0
        %1587 = vmatpush1.bf16.msra.mxu0 0
        %1588 = vmatprep.subr.bf16.mxu0 0
        %1589 = vmatpush1.bf16.msra.mxu0 0
        %1590 = vmatprep.subr.bf16.mxu0 0
        %1591 = vmatpush1.bf16.msra.mxu0 0
        %1592 = vmatprep.subr.bf16.mxu0 0
        %1593 = vmatpush1.bf16.msra.mxu0 0
        %1594 = vmatprep.subr.bf16.mxu0 0
        %1595 = vmatpush1.bf16.msra.mxu0 0
        %1596 = vmatprep.subr.bf16.mxu0 0
        %1597 = vmatpush1.bf16.msra.mxu0 0
        %1598 = vmatprep.subr.bf16.mxu0 0
        %1599 = vmatpush1.bf16.msra.mxu0 0
        %1600 = vmatprep.subr.bf16.mxu0 0
        %1601 = vmatpush1.bf16.msra.mxu0 0
        %1602 = vmatprep.subr.bf16.mxu0 0
        %1603 = vmatpush1.bf16.msra.mxu0 0
        %1604 = vmatprep.subr.bf16.mxu0 0
        %1605 = vmatpush1.bf16.msra.mxu0 0
        %1606 = vmatprep.subr.bf16.mxu0 0
        %1607 = vmatpush1.bf16.msra.mxu0 0
        %1608 = vmatprep.subr.bf16.mxu0 0
        %1609 = vmatpush1.bf16.msra.mxu0 0
        %1610 = vmatprep.subr.bf16.mxu0 0
        %1611 = vmatpush1.bf16.msra.mxu0 0
        %1612 = vmatprep.subr.bf16.mxu0 0
        %1613 = vmatpush1.bf16.msra.mxu0 0
        %1614 = vmatprep.subr.bf16.mxu0 0
        %1615 = vmatpush1.bf16.msra.mxu0 0
        %1616 = vmatprep.mubr.bf16.mxu0 0
        %1617 = vmatmul.mubr.bf16.gmra.mrb[0].mxu0 %v1582
        %v1618 = vpop.f32.mrb[0].mxu0
        %v1619 = vadd.f32 0.0, %v1618
        %v1620 = vpop.f32.mrb[0].mxu0
        %v1621 = vpop.f32.mrb[0].mxu0
        %v1622 = vpop.f32.mrb[0].mxu0
        %1623 = vdwg.mxu0
        %v1624 = vadd.f32 %v1573, %v1619
        %v1626 = vlaneseq
        %v1627 = vshrl.u32 %v1626, 7
        %v1628 = vsub.s32 0, %v1627
        %v1629 = vrot.slane %v834, %v1628
        %v1631 = vadd.f32 %v1624, %v1629
        %1632 = vst.msk [vmem:[%s740] sm:$0xff] %vm1029, %v1040
        %1633 = vst.msk [vmem:[%s740 + $0x8] sm:$0xff] %vm1029, %v1153
        %1634 = vst.msk [vmem:[%s740 + $0x10] sm:$0xff] %vm1029, %v1263
        %1635 = vst.msk [vmem:[%s740 + $0x18] sm:$0xff] %vm1029, %v1373
        %v1636 = vld [vmem:[%s771] sm:$0x1]
        %v1637 = vld [vmem:[%s774] sm:$0x1]
        %v1638 = vadd.f32 %v806, %v1631
        %v1639 = vsel %vm866, %v1638, 0.0
        %1640 = vadd.xlane.f32.xlu0 %v1639
        %v1641 = vpop.xlane.xlu0 %1640
        %v1642 = vrcp.pop 64.0
        %v1643 = vmul.f32 %v1641, %v1642
        %v1644 = vsub.f32 %v1638, %v1643
        %v1645 = vmul.f32 %v1644, %v1644
        %v1646 = vsel %vm866, %v1645, 0.0
        %1647 = vadd.xlane.f32.xlu0 %v1646
        %v1648 = vpop.xlane.xlu0 %1647
        %v1649 = vmul.f32 %v1648, %v1642
        %v1650 = vadd.f32 %v1649, 1e-05
        %v1651 = vrsqrt.pop %v1650
        %v1652 = vmul.f32 %v1644, %v1651
        %v1654 = vlaneseq
        %v1655 = vshrl.u32 %v1654, 7
        %v1656 = vsub.s32 0, %v1655
        %v1657 = vrot.slane %v1636, %v1656
        %v1659 = vmul.f32 %v1652, %v1657
        %v1661 = vlaneseq
        %v1662 = vshrl.u32 %v1661, 7
        %v1663 = vsub.s32 0, %v1662
        %v1664 = vrot.slane %v1637, %v1663
        %v1666 = vadd.f32 %v1659, %v1664
        %v1667 = vld [vmem:[%s779] sm:$0xff]
        %v1668 = vld [vmem:[%s779 + $0x8] sm:$0xff]
        %v1669 = vld [vmem:[%s779 + $0x10] sm:$0xff]
        %v1670 = vld [vmem:[%s779 + $0x18] sm:$0xff]
        %v1671 = vld [vmem:[%s779 + $0x20] sm:$0xff]
        %v1672 = vld [vmem:[%s779 + $0x28] sm:$0xff]
        %v1673 = vld [vmem:[%s779 + $0x30] sm:$0xff]
        %v1674 = vld [vmem:[%s779 + $0x38] sm:$0xff]
        %v1675 = vld [vmem:[%s783] sm:$0x3]
        %v1676 = vld [vmem:[%s788] sm:$0xf]
        %v1677 = vld [vmem:[%s788 + $0x4] sm:$0xf]
        %v1678 = vld [vmem:[%s788 + $0x8] sm:$0xf]
        %v1679 = vld [vmem:[%s788 + $0xc] sm:$0xf]
        %v1680 = vld [vmem:[%s788 + $0x10] sm:$0xf]
        %v1681 = vld [vmem:[%s788 + $0x14] sm:$0xf]
        %v1682 = vld [vmem:[%s788 + $0x18] sm:$0xf]
        %v1683 = vld [vmem:[%s788 + $0x1c] sm:$0xf]
        %v1684 = vld [vmem:[%s788 + $0x20] sm:$0xf]
        %v1685 = vld [vmem:[%s788 + $0x24] sm:$0xf]
        %v1686 = vld [vmem:[%s788 + $0x28] sm:$0xf]
        %v1687 = vld [vmem:[%s788 + $0x2c] sm:$0xf]
        %v1688 = vld [vmem:[%s788 + $0x30] sm:$0xf]
        %v1689 = vld [vmem:[%s788 + $0x34] sm:$0xf]
        %v1690 = vld [vmem:[%s788 + $0x38] sm:$0xf]
        %v1691 = vld [vmem:[%s788 + $0x3c] sm:$0xf]
        %v1692 = vld [vmem:[%s788 + $0x40] sm:$0xf]
        %v1693 = vld [vmem:[%s788 + $0x44] sm:$0xf]
        %v1694 = vld [vmem:[%s788 + $0x48] sm:$0xf]
        %v1695 = vld [vmem:[%s788 + $0x4c] sm:$0xf]
        %v1696 = vld [vmem:[%s788 + $0x50] sm:$0xf]
        %v1697 = vld [vmem:[%s788 + $0x54] sm:$0xf]
        %v1698 = vld [vmem:[%s788 + $0x58] sm:$0xf]
        %v1699 = vld [vmem:[%s788 + $0x5c] sm:$0xf]
        %v1700 = vld [vmem:[%s788 + $0x60] sm:$0xf]
        %v1701 = vld [vmem:[%s788 + $0x64] sm:$0xf]
        %v1702 = vld [vmem:[%s788 + $0x68] sm:$0xf]
        %v1703 = vld [vmem:[%s788 + $0x6c] sm:$0xf]
        %v1704 = vld [vmem:[%s788 + $0x70] sm:$0xf]
        %v1705 = vld [vmem:[%s788 + $0x74] sm:$0xf]
        %v1706 = vld [vmem:[%s788 + $0x78] sm:$0xf]
        %v1707 = vld [vmem:[%s788 + $0x7c] sm:$0xf]
        %v1708 = vld [vmem:[%s791] sm:$0x1]
        %v1709 = vpack.c.bf16 %v1666, %v1666
        %v1711 = vlaneseq
        %v1712 = vshrl.u32 %v1711, 7
        %v1713 = vsub.s32 0, %v1712
        %v1714 = vrot.slane %v1675, %v1713
        %v1715 = vlaneseq
        %v1716 = vshrl.u32 %v1715, 7
        %v1717 = vsub.s32 1, %v1716
        %v1718 = vrot.slane %v1675, %v1717
        %v1729 = vunpack.c.l.b16 %v1667
        %v1730 = vunpack.c.h.b16 %v1667
        %v1731 = vunpack.c.l.b16 %v1668
        %v1732 = vunpack.c.h.b16 %v1668
        %v1733 = vunpack.c.l.b16 %v1669
        %v1734 = vunpack.c.h.b16 %v1669
        %v1735 = vunpack.c.l.b16 %v1670
        %v1736 = vunpack.c.h.b16 %v1670
        %v1737 = vunpack.c.l.b16 %v1671
        %v1738 = vunpack.c.h.b16 %v1671
        %v1739 = vunpack.c.l.b16 %v1672
        %v1740 = vunpack.c.h.b16 %v1672
        %v1741 = vunpack.c.l.b16 %v1673
        %v1742 = vunpack.c.h.b16 %v1673
        %v1743 = vunpack.c.l.b16 %v1674
        %v1744 = vunpack.c.h.b16 %v1674
        %v1745 = vpack.c.b16 %v1731, %v1729
        %v1746 = vpack.c.b16 %v1732, %v1730
        %v1747 = vpack.c.b16 %v1735, %v1733
        %v1748 = vpack.c.b16 %v1736, %v1734
        %v1749 = vpack.c.b16 %v1739, %v1737
        %v1750 = vpack.c.b16 %v1740, %v1738
        %v1751 = vpack.c.b16 %v1743, %v1741
        %v1752 = vpack.c.b16 %v1744, %v1742
        %v1762 = vsel %vm866, %v1709, 0
        %1764 = vmatprep.subr.bf16.mxu0 %v1746
        %1765 = vmatpush1.bf16.msra.mxu0 %v1745
        %1766 = vmatprep.subr.bf16.mxu0 %v1748
        %1767 = vmatpush1.bf16.msra.mxu0 %v1747
        %1768 = vmatprep.subr.bf16.mxu0 %v1750
        %1769 = vmatpush1.bf16.msra.mxu0 %v1749
        %1770 = vmatprep.subr.bf16.mxu0 %v1752
        %1771 = vmatpush1.bf16.msra.mxu0 %v1751
        %1772 = vmatprep.subr.bf16.mxu0 0
        %1773 = vmatpush1.bf16.msra.mxu0 0
        %1774 = vmatprep.subr.bf16.mxu0 0
        %1775 = vmatpush1.bf16.msra.mxu0 0
        %1776 = vmatprep.subr.bf16.mxu0 0
        %1777 = vmatpush1.bf16.msra.mxu0 0
        %1778 = vmatprep.subr.bf16.mxu0 0
        %1779 = vmatpush1.bf16.msra.mxu0 0
        %1780 = vmatprep.subr.bf16.mxu0 0
        %1781 = vmatpush1.bf16.msra.mxu0 0
        %1782 = vmatprep.subr.bf16.mxu0 0
        %1783 = vmatpush1.bf16.msra.mxu0 0
        %1784 = vmatprep.subr.bf16.mxu0 0
        %1785 = vmatpush1.bf16.msra.mxu0 0
        %1786 = vmatprep.subr.bf16.mxu0 0
        %1787 = vmatpush1.bf16.msra.mxu0 0
        %1788 = vmatprep.subr.bf16.mxu0 0
        %1789 = vmatpush1.bf16.msra.mxu0 0
        %1790 = vmatprep.subr.bf16.mxu0 0
        %1791 = vmatpush1.bf16.msra.mxu0 0
        %1792 = vmatprep.subr.bf16.mxu0 0
        %1793 = vmatpush1.bf16.msra.mxu0 0
        %1794 = vmatprep.subr.bf16.mxu0 0
        %1795 = vmatpush1.bf16.msra.mxu0 0
        %1796 = vmatprep.mubr.bf16.mxu0 0
        %1797 = vmatmul.mubr.bf16.gmra.mrb[0].mxu0 %v1762
        %v1798 = vpop.f32.mrb[0].mxu0
        %v1799 = vadd.f32 %v1714, %v1798
        %v1800 = vpop.f32.mrb[0].mxu0
        %v1801 = vadd.f32 %v1718, %v1800
        %v1802 = vpop.f32.mrb[0].mxu0
        %v1803 = vpop.f32.mrb[0].mxu0
        %1804 = vdwg.mxu0
        %v1805 = vmax.f32 %v1799, 0.0
        %v1806 = vmax.f32 %v1801, 0.0
        %v1807 = vpack.c.bf16 %v1805, %v1805
        %v1808 = vpack.c.bf16 %v1806, %v1806
        %v1810 = vlaneseq
        %v1811 = vshrl.u32 %v1810, 7
        %v1812 = vsub.s32 0, %v1811
        %v1813 = vrot.slane %v1708, %v1812
        %v1847 = vunpack.c.l.b16 %v1676
        %v1848 = vunpack.c.l.b16 %v1677
        %v1849 = vunpack.c.l.b16 %v1678
        %v1850 = vunpack.c.l.b16 %v1679
        %v1851 = vunpack.c.l.b16 %v1680
        %v1852 = vunpack.c.l.b16 %v1681
        %v1853 = vunpack.c.l.b16 %v1682
        %v1854 = vunpack.c.l.b16 %v1683
        %v1855 = vunpack.c.l.b16 %v1684
        %v1856 = vunpack.c.l.b16 %v1685
        %v1857 = vunpack.c.l.b16 %v1686
        %v1858 = vunpack.c.l.b16 %v1687
        %v1859 = vunpack.c.l.b16 %v1688
        %v1860 = vunpack.c.l.b16 %v1689
        %v1861 = vunpack.c.l.b16 %v1690
        %v1862 = vunpack.c.l.b16 %v1691
        %v1863 = vunpack.c.l.b16 %v1692
        %v1864 = vunpack.c.l.b16 %v1693
        %v1865 = vunpack.c.l.b16 %v1694
        %v1866 = vunpack.c.l.b16 %v1695
        %v1867 = vunpack.c.l.b16 %v1696
        %v1868 = vunpack.c.l.b16 %v1697
        %v1869 = vunpack.c.l.b16 %v1698
        %v1870 = vunpack.c.l.b16 %v1699
        %v1871 = vunpack.c.l.b16 %v1700
        %v1872 = vunpack.c.l.b16 %v1701
        %v1873 = vunpack.c.l.b16 %v1702
        %v1874 = vunpack.c.l.b16 %v1703
        %v1875 = vunpack.c.l.b16 %v1704
        %v1876 = vunpack.c.l.b16 %v1705
        %v1877 = vunpack.c.l.b16 %v1706
        %v1878 = vunpack.c.l.b16 %v1707
        %v1879 = vpack.c.b16 %v1848, %v1847
        %v1880 = vpack.c.b16 %v1850, %v1849
        %v1881 = vpack.c.b16 %v1852, %v1851
        %v1882 = vpack.c.b16 %v1854, %v1853
        %v1883 = vpack.c.b16 %v1856, %v1855
        %v1884 = vpack.c.b16 %v1858, %v1857
        %v1885 = vpack.c.b16 %v1860, %v1859
        %v1886 = vpack.c.b16 %v1862, %v1861
        %v1887 = vpack.c.b16 %v1864, %v1863
        %v1888 = vpack.c.b16 %v1866, %v1865
        %v1889 = vpack.c.b16 %v1868, %v1867
        %v1890 = vpack.c.b16 %v1870, %v1869
        %v1891 = vpack.c.b16 %v1872, %v1871
        %v1892 = vpack.c.b16 %v1874, %v1873
        %v1893 = vpack.c.b16 %v1876, %v1875
        %v1894 = vpack.c.b16 %v1878, %v1877
        %1911 = vmatprep.subr.bf16.mxu0 0
        %1912 = vmatpush1.bf16.msra.mxu0 %v1879
        %1913 = vmatprep.subr.bf16.mxu0 0
        %1914 = vmatpush1.bf16.msra.mxu0 %v1880
        %1915 = vmatprep.subr.bf16.mxu0 0
        %1916 = vmatpush1.bf16.msra.mxu0 %v1881
        %1917 = vmatprep.subr.bf16.mxu0 0
        %1918 = vmatpush1.bf16.msra.mxu0 %v1882
        %1919 = vmatprep.subr.bf16.mxu0 0
        %1920 = vmatpush1.bf16.msra.mxu0 %v1883
        %1921 = vmatprep.subr.bf16.mxu0 0
        %1922 = vmatpush1.bf16.msra.mxu0 %v1884
        %1923 = vmatprep.subr.bf16.mxu0 0
        %1924 = vmatpush1.bf16.msra.mxu0 %v1885
        %1925 = vmatprep.subr.bf16.mxu0 0
        %1926 = vmatpush1.bf16.msra.mxu0 %v1886
        %1927 = vmatprep.subr.bf16.mxu0 0
        %1928 = vmatpush1.bf16.msra.mxu0 %v1887
        %1929 = vmatprep.subr.bf16.mxu0 0
        %1930 = vmatpush1.bf16.msra.mxu0 %v1888
        %1931 = vmatprep.subr.bf16.mxu0 0
        %1932 = vmatpush1.bf16.msra.mxu0 %v1889
        %1933 = vmatprep.subr.bf16.mxu0 0
        %1934 = vmatpush1.bf16.msra.mxu0 %v1890
        %1935 = vmatprep.subr.bf16.mxu0 0
        %1936 = vmatpush1.bf16.msra.mxu0 %v1891
        %1937 = vmatprep.subr.bf16.mxu0 0
        %1938 = vmatpush1.bf16.msra.mxu0 %v1892
        %1939 = vmatprep.subr.bf16.mxu0 0
        %1940 = vmatpush1.bf16.msra.mxu0 %v1893
        %1941 = vmatprep.subr.bf16.mxu0 0
        %1942 = vmatpush1.bf16.msra.mxu0 %v1894
        %1943 = vmatprep.mubr.bf16.mxu0 %v1808
        %1944 = vmatmul.mubr.bf16.gmra.mrb[0].mxu0 %v1807
        %v1945 = vpop.f32.mrb[0].mxu0
        %v1946 = vadd.f32 %v1813, %v1945
        %v1947 = vpop.f32.mrb[0].mxu0
        %v1948 = vpop.f32.mrb[0].mxu0
        %v1949 = vpop.f32.mrb[0].mxu0
        %1950 = vdwg.mxu0
        %v1951 = vld [vmem:[%s794] sm:$0x1]
        %v1952 = vld [vmem:[%s797] sm:$0x1]
        %v1953 = vadd.f32 %v1666, %v1946
        %v1954 = vsel %vm866, %v1953, 0.0
        %1955 = vadd.xlane.f32.xlu0 %v1954
        %v1956 = vpop.xlane.xlu0 %1955
        %v1957 = vmul.f32 %v1956, %v1642
        %v1958 = vsub.f32 %v1953, %v1957
        %v1959 = vmul.f32 %v1958, %v1958
        %v1960 = vsel %vm866, %v1959, 0.0
        %1961 = vadd.xlane.f32.xlu0 %v1960
        %v1962 = vpop.xlane.xlu0 %1961
        %v1963 = vmul.f32 %v1962, %v1642
        %v1964 = vadd.f32 %v1963, 1e-05
        %v1965 = vrsqrt.pop %v1964
        %v1966 = vmul.f32 %v1958, %v1965
        %v1968 = vlaneseq
        %v1969 = vshrl.u32 %v1968, 7
        %v1970 = vsub.s32 0, %v1969
        %v1971 = vrot.slane %v1951, %v1970
        %v1973 = vmul.f32 %v1966, %v1971
        %v1975 = vlaneseq
        %v1976 = vshrl.u32 %v1975, 7
        %v1977 = vsub.s32 0, %v1976
        %v1978 = vrot.slane %v1952, %v1977
        %v1980 = vadd.f32 %v1973, %v1978
        %1981 = vst.msk [vmem:[%s733] sm:$0xff] %vm866, %v1980
        %s1982 = sand.u32 %s466, 1
        %s1983 = scalar_lea.sflag [#allocation3], %s1982
        %s1984 = sand.u32 %s466, 1
        %s1985 = smul.addr %s1984, 8
        %s1986 = scalar_lea.vmem [#allocation2], %s1985
        %s1987 = sand.u32 %s494, 1
        %s1988 = scalar_lea.sflag [#allocation5], %s1987
        %s1989 = sand.u32 %s494, 1
        %s1990 = smul.addr %s1989, 32
        %s1991 = scalar_lea.vmem [#allocation4], %s1990
        // Predicated region
        $region89: #{tpu_custom_call.1} parent=83 // pred_check
          %p1992 = pneg %p476
        $region90: #{tpu_custom_call.1} parent=83 // pred_check_branch
          %1994 = sbr.rel (%p1992) target = $region92
        $region91: #{tpu_custom_call.1} parent=83 // pred_region
          %s1996 = ssub.s32 128, 128
          %1997 = vsyncadd %s1983, %s1996
          %s1998 = smul.addr %s39, 128
          %s1999 = scalar_lea.hbm %s16, %s1998
          %s2001 = sshll.u32 %s1986, 4
          %s2002 = int_to_ptr.vmem [resolvable:$true] %s2001
          %2004 = dma.vmem_to_hbm [thread:$0]  %s2002, 128, %s1999, %s1983
        $region92: #{tpu_custom_call.1} parent=83 // pred_fallthru
          _
        // Predicated region
        $region93: #{tpu_custom_call.1} parent=83 // pred_check
          %p2005 = pneg %p504
        $region94: #{tpu_custom_call.1} parent=83 // pred_check_branch
          %2007 = sbr.rel (%p2005) target = $region96
        $region95: #{tpu_custom_call.1} parent=83 // pred_region
          %s2009 = ssub.s32 512, 512
          %2010 = vsyncadd %s1988, %s2009
          %s2011 = smul.addr %s39, 4
          %s2012 = smul.addr %s40, 8
          %s2013 = sadd.s32 %s2011, %s2012
          %s2014 = smul.addr %s2013, 128
          %s2015 = scalar_lea.hbm %s17, %s2014
          %s2016 = sshll.u32 %s1991, 4
          %s2017 = int_to_ptr.vmem [resolvable:$true] %s2016
          %2022 = dma.vmem_to_hbm [thread:$0]  %s2017, 512, %s2015, %s1988, 128, 128, 8
        $region96: #{tpu_custom_call.1} parent=83 // pred_fallthru
          _
      $region84: #{tpu_custom_call.1} parent=5 // pred_fallthru
        _
      %p2023 = scmp.le.s32.totalorder 2, %s30
      // Predicated region
      $region97: #{tpu_custom_call.1} parent=5 // pred_check
        %p2024 = pneg %p2023
      $region98: #{tpu_custom_call.1} parent=5 // pred_check_branch
        %2026 = sbr.rel (%p2024) target = $region100
      $region99: #{tpu_custom_call.1} parent=5 // pred_region
        %s2027 = ssub.s32 %s30, 2
        // Predicated region
        $region101: #{tpu_custom_call.1} parent=99 // pred_check
          %p2028 = pneg %p482
        $region102: #{tpu_custom_call.1} parent=99 // pred_check_branch
          %2030 = sbr.rel (%p2028) target = $region104
        $region103: #{tpu_custom_call.1} parent=99 // pred_region
          %s2031 = sand.u32 %s467, 1
          %s2032 = scalar_lea.sflag [#allocation3], %s2031
          %s2033 = sand.u32 %s467, 1
          %s2034 = smul.addr %s2033, 8
          %s2035 = scalar_lea.vmem [#allocation2], %s2034
          %2036 = dma.done %s2032, 128
        $region104: #{tpu_custom_call.1} parent=99 // pred_fallthru
          _
        // Predicated region
        $region105: #{tpu_custom_call.1} parent=99 // pred_check
          %p2037 = pneg %p510
        $region106: #{tpu_custom_call.1} parent=99 // pred_check_branch
          %2039 = sbr.rel (%p2037) target = $region108
        $region107: #{tpu_custom_call.1} parent=99 // pred_region
          %s2040 = sand.u32 %s495, 1
          %s2041 = scalar_lea.sflag [#allocation5], %s2040
          %s2042 = sand.u32 %s495, 1
          %s2043 = smul.addr %s2042, 32
          %s2044 = scalar_lea.vmem [#allocation4], %s2043
          %2045 = dma.done %s2041, 512
        $region108: #{tpu_custom_call.1} parent=99 // pred_fallthru
          _
      $region100: #{tpu_custom_call.1} parent=5 // pred_fallthru
        _
    $region6: #{tpu_custom_call.1} parent=1 // loop_footer
      %s34 = sadd.s32 1, %s30
    $region7: #{tpu_custom_call.1} parent=1 // loop_footer_branch
      %29 = sbr.rel target = $region3
    $region8: #{tpu_custom_call.1} parent=1 // loop_exit
      _
    %2046 = vsyncpa [#allocation3], 1
    %s2047 = scalar_lea.sflag [#allocation3], 1
    %2048 = vsyncpa %s2047, 1
    %2049 = vsyncpa [#allocation5], 1
    %s2050 = scalar_lea.sflag [#allocation5], 1
    %2051 = vsyncpa %s2050, 1

</llo_original>
